<compile_context>
chip_gen: v7x
topology: tpu7x:2x2x1
jax: 0.10.0
libtpu: 0.0.40
codegen_flags: <defaults>
</compile_context>

<pallas_src>
import math
import functools

import jax
import jax.numpy as jnp
from jax.experimental import pallas as pl
from jax.experimental.pallas import tpu as pltpu


def _layernorm(v, w, b, eps=1e-5):
    mu = jnp.mean(v, axis=-1, keepdims=True)
    var = jnp.mean((v - mu) ** 2, axis=-1, keepdims=True)
    return (v - mu) * jax.lax.rsqrt(var + eps) * w + b


def _stack_heads(x2d, num_heads, head_dim, col_offset=0):
    # (T, C) -> (H, T, hd) via static lane slices + leading-axis stack
    # (avoids in-kernel major-dim transposes; slices are layout-static).
    return jnp.stack(
        [x2d[:, col_offset + h * head_dim: col_offset + (h + 1) * head_dim]
         for h in range(num_heads)], axis=0)


def encoder_block_kernel(xq_ref, xkv_ref, mask_ref,
                         wq_ref, wkv_ref, wo_ref,
                         ln1w_ref, ln1b_ref, w1_ref, b1_ref, w2_ref, b2_ref,
                         ln2w_ref, ln2b_ref,
                         y_ref,
                         q_s, m_s, l_s, acc_s,
                         *, num_heads, head_dim):
    ki = pl.program_id(2)
    H, hd = num_heads, head_dim
    D = H * hd
    scale = 1.0 / math.sqrt(hd)

    # ---- once per query tile: fused Q projection + online-softmax init ----
    @pl.when(ki == 0)
    def _():
        xq = xq_ref[0].astype(jnp.bfloat16)                                # (Tq, D)
        q = jnp.dot(xq, wq_ref[...], preferred_element_type=jnp.float32) * scale
        q_s[...] = _stack_heads(q, H, hd).astype(jnp.bfloat16)             # (H, Tq, hd)
        m_s[...] = jnp.full_like(m_s, -jnp.inf)
        l_s[...] = jnp.zeros_like(l_s)
        acc_s[...] = jnp.zeros_like(acc_s)

    # ---- per key tile: fused K+V projection (single matmul) + softmax update ----
    # TODO(synk): when T > Tq, the K/V projection of a key tile is recomputed once per
    #   query tile; a two-pass (pre-projected KV) variant trades that compute for HBM
    #   traffic and only pays off for very long sequences.
    xkv = xkv_ref[0].astype(jnp.bfloat16)                                  # (Tk, D)
    kv = jnp.dot(xkv, wkv_ref[...], preferred_element_type=jnp.float32)    # (Tk, 2D)
    k3 = _stack_heads(kv, H, hd, col_offset=0).astype(jnp.bfloat16)        # (H, Tk, hd)
    v3 = _stack_heads(kv, H, hd, col_offset=D).astype(jnp.bfloat16)        # (H, Tk, hd)

    s = jnp.einsum('hqd,hkd->hqk', q_s[...], k3,
                   preferred_element_type=jnp.float32)                     # (H, Tq, Tk)
    s = s + mask_ref[0]                              # additive key-padding mask, (1, Tk)

    m_new = jnp.maximum(m_s[...], jnp.max(s, axis=-1, keepdims=True))      # (H, Tq, 1)
    alpha = jnp.exp(m_s[...] - m_new)
    p = jnp.exp(s - m_new)
    l_s[...] = alpha * l_s[...] + jnp.sum(p, axis=-1, keepdims=True)
    acc_s[...] = alpha * acc_s[...] + jnp.einsum(
        'hqk,hkd->hqd', p.astype(jnp.bfloat16), v3,
        preferred_element_type=jnp.float32)
    m_s[...] = m_new

    # ---- once per query tile (last key tile): out-proj, AddNorm1, FFN, AddNorm2 ----
    @pl.when(ki == pl.num_programs(2) - 1)
    def _():
        xq = xq_ref[0].astype(jnp.float32)                                 # (Tq, D)
        # Clamped approx reciprocal (EUP slot) guards valid_len == 0 rows.
        inv_l = pl.reciprocal(jnp.maximum(l_s[...], 1e-20), approx=True)
        ctx = acc_s[...] * inv_l                                           # (H, Tq, hd)
        # Merge heads (lane concat) -> single full-width out-projection.
        ctx2 = jnp.concatenate([ctx[h] for h in range(H)], axis=-1)        # (Tq, D)
        attn = jnp.dot(ctx2.astype(jnp.bfloat16), wo_ref[...],
                       preferred_element_type=jnp.float32)                 # (Tq, D)

        # AddNorm1: dropout(LN(attn) + x), dropout = identity.
        h1 = _layernorm(attn, ln1w_ref[...], ln1b_ref[...]) + xq

        # Position-wise FFN: dense2(relu(dense1(h1))).
        # TODO(synk): for very large F, additionally tile the F dimension with an f32
        #   VMEM accumulator so the ReLU intermediate lives as (Tq, F_tile).
        f = jnp.dot(h1.astype(jnp.bfloat16), w1_ref[...],
                    preferred_element_type=jnp.float32) + b1_ref[...]
        f = jnp.maximum(f, 0.0)
        f = jnp.dot(f.astype(jnp.bfloat16), w2_ref[...],
                    preferred_element_type=jnp.float32) + b2_ref[...]

        # AddNorm2: dropout(LN(f) + h1), dropout = identity.
        h2 = _layernorm(f, ln2w_ref[...], ln2b_ref[...]) + h1
        y_ref[0] = h2.astype(y_ref.dtype)


def _pick_tile(n, max_tile=512):
    """Largest tile <= max_tile that evenly divides n (keeps (8,128) blocks aligned)."""
    if n <= max_tile:
        return n
    for t in (max_tile, 256, 128):
        if n % t == 0:
            return t
    return n


def encoder_block(x, mask, blk, num_heads):
    B, T, D = x.shape
    H = num_heads
    hd = D // H
    F = blk["w1"].shape[1]
    Tq = _pick_tile(T)
    Tk = _pick_tile(T)
    nq, nk = T // Tq, T // Tk

    def w_spec(shape):
        # Full weight block, constant index_map -> fetched once, revisited across grid.
        return pl.BlockSpec(shape, lambda b, qi, ki, _n=len(shape): (0,) * _n)

    kern = functools.partial(encoder_block_kernel, num_heads=H, head_dim=hd)
    return pl.pallas_call(
        kern,
        out_shape=jax.ShapeDtypeStruct((B, T, D), x.dtype),
        grid=(B, nq, nk),
        in_specs=[
            pl.BlockSpec((1, Tq, D), lambda b, qi, ki: (b, qi, 0)),   # x (query tile)
            pl.BlockSpec((1, Tk, D), lambda b, qi, ki: (b, ki, 0)),   # x (key/value tile)
            pl.BlockSpec((1, 1, Tk), lambda b, qi, ki: (b, 0, ki)),   # additive key mask
            w_spec((D, D)), w_spec((D, 2 * D)), w_spec((D, D)),       # Wq, W[k|v], Wo
            w_spec((1, D)), w_spec((1, D)),                           # ln1 w, b
            w_spec((D, F)), w_spec((1, F)),                           # ffn dense1 w, b
            w_spec((F, D)), w_spec((1, D)),                           # ffn dense2 w, b
            w_spec((1, D)), w_spec((1, D)),                           # ln2 w, b
        ],
        out_specs=pl.BlockSpec((1, Tq, D), lambda b, qi, ki: (b, qi, 0)),
        scratch_shapes=[
            pltpu.VMEM((H, Tq, hd), jnp.bfloat16),   # per-head Q tile
            pltpu.VMEM((H, Tq, 1), jnp.float32),     # online-softmax running max
            pltpu.VMEM((H, Tq, 1), jnp.float32),     # online-softmax running denom
            pltpu.VMEM((H, Tq, hd), jnp.float32),    # context accumulator
        ],
        compiler_params=pltpu.CompilerParams(
            dimension_semantics=("parallel", "parallel", "arbitrary")),
    )(x, x, mask,
      blk["wq"], blk["wkv"], blk["wo"],
      blk["ln1_w"], blk["ln1_b"], blk["w1"], blk["b1"],
      blk["w2"], blk["b2"], blk["ln2_w"], blk["ln2_b"])


def make_pos_encoding(max_len, d):
    pos = jnp.arange(max_len, dtype=jnp.float32)[:, None]
    denom = jnp.power(10000.0, jnp.arange(0, d, 2, dtype=jnp.float32) / d)
    ang = pos / denom
    P = jnp.zeros((max_len, d), jnp.float32)
    P = P.at[:, 0::2].set(jnp.sin(ang))
    P = P.at[:, 1::2].set(jnp.cos(ang))
    return P


def init_params(key, vocab, D, F, H, num_blks, max_len=1000):
    keys = jax.random.split(key, 1 + num_blks)
    params = {
        "embedding": jax.random.normal(keys[0], (vocab, D), jnp.float32),
        "pos": make_pos_encoding(max_len, D),
        "blocks": [],
    }
    s = 0.1
    wdt = jnp.bfloat16   # matmul weights in bf16; biases / LN params stay f32
    for i in range(num_blks):
        ks = jax.random.split(keys[1 + i], 8)
        wk = jax.random.normal(ks[1], (D, D), jnp.float32) * s
        wv = jax.random.normal(ks[2], (D, D), jnp.float32) * s
        params["blocks"].append({
            # fused (in, out) projection weights (y = x @ W)
            "wq": (jax.random.normal(ks[0], (D, D), jnp.float32) * s).astype(wdt),
            "wkv": jnp.concatenate([wk, wv], axis=1).astype(wdt),   # (D, 2D)
            "wo": (jax.random.normal(ks[3], (D, D), jnp.float32) * s).astype(wdt),
            "ln1_w": jnp.ones((1, D), jnp.float32),
            "ln1_b": jnp.zeros((1, D), jnp.float32),
            "w1": (jax.random.normal(ks[4], (D, F), jnp.float32) * s).astype(wdt),
            "b1": jax.random.normal(ks[5], (1, F), jnp.float32) * s,
            "w2": (jax.random.normal(ks[6], (F, D), jnp.float32) * s).astype(wdt),
            "b2": jax.random.normal(ks[7], (1, D), jnp.float32) * s,
            "ln2_w": jnp.ones((1, D), jnp.float32),
            "ln2_b": jnp.zeros((1, D), jnp.float32),
        })
    return params


def transformer_encoder(tokens, valid_lens, params, num_heads):
    # Glue (one fused XLA op): embedding gather, sqrt(D) scale, sinusoidal positions.
    emb = params["embedding"][tokens]                    # (B, T, D)
    B, T = tokens.shape
    D = emb.shape[-1]
    x = emb * math.sqrt(D) + params["pos"][None, :T, :]
    # Additive key-padding mask from valid lengths: keys j >= valid_len[b] are masked.
    mask = jnp.where(jnp.arange(T)[None, :] < valid_lens[:, None], 0.0, -1e9)
    mask = mask.astype(jnp.float32)[:, None, :]          # (B, 1, T)
    for blk in params["blocks"]:
        x = encoder_block(x, mask, blk, num_heads)
    return x


if __name__ == "__main__":
    B, T = 2, 8
    vocab_size, num_hiddens, ffn_num_hiddens, num_heads, num_blks = 50, 32, 64, 4, 2

    key = jax.random.PRNGKey(0)
    k_tok, k_par = jax.random.split(key)
    tokens = jax.random.randint(k_tok, (B, T), 0, vocab_size, dtype=jnp.int32)
    valid_lens = jnp.array([8, 5], dtype=jnp.int32)

    params = init_params(k_par, vocab_size, num_hiddens, ffn_num_hiddens,
                         num_heads, num_blks)

    out = transformer_encoder(tokens, valid_lens, params, num_heads)
    jax.block_until_ready(out)
    assert out.shape == (B, T, num_hiddens)
    print("KERNEL_OK")
</pallas_src>

<mosaic_0001>
module attributes {stable_mosaic.version = 11 : i64} {
  func.func @encoder_block_kernel(%arg0: i32, %arg1: i32, %arg2: i32, %arg3: memref<1x8x32xf32, #tpu.memory_space<vmem>>, %arg4: memref<1x8x32xf32, #tpu.memory_space<vmem>>, %arg5: memref<1x1x8xf32, #tpu.memory_space<vmem>>, %arg6: memref<32x32xbf16, #tpu.memory_space<vmem>>, %arg7: memref<32x64xbf16, #tpu.memory_space<vmem>>, %arg8: memref<32x32xbf16, #tpu.memory_space<vmem>>, %arg9: memref<1x32xf32, #tpu.memory_space<vmem>>, %arg10: memref<1x32xf32, #tpu.memory_space<vmem>>, %arg11: memref<32x64xbf16, #tpu.memory_space<vmem>>, %arg12: memref<1x64xf32, #tpu.memory_space<vmem>>, %arg13: memref<64x32xbf16, #tpu.memory_space<vmem>>, %arg14: memref<1x32xf32, #tpu.memory_space<vmem>>, %arg15: memref<1x32xf32, #tpu.memory_space<vmem>>, %arg16: memref<1x32xf32, #tpu.memory_space<vmem>>, %arg17: memref<1x8x32xf32, #tpu.memory_space<vmem>>, %arg18: memref<4x8x8xbf16, #tpu.memory_space<vmem>>, %arg19: memref<4x8x1xf32, #tpu.memory_space<vmem>>, %arg20: memref<4x8x1xf32, #tpu.memory_space<vmem>>, %arg21: memref<4x8x8xf32, #tpu.memory_space<vmem>>) attributes {dimension_semantics = [#tpu.dimension_semantics<parallel>, #tpu.dimension_semantics<parallel>, #tpu.dimension_semantics<arbitrary>], iteration_bounds = array<i64: 2, 1, 1>, scalar_prefetch = 0 : i64, scratch_operands = 4 : i64, tpu.core_type = #tpu.core_type<tc>, window_params = [{transform_indices = @transform_0, window_bounds = array<i64: 1, 8, 32>}, {transform_indices = @transform_1, window_bounds = array<i64: 1, 8, 32>}, {transform_indices = @transform_2, window_bounds = array<i64: 1, 1, 8>}, {pipeline_mode = #tpu.pipeline_mode<synchronous>, transform_indices = @transform_3, window_bounds = array<i64: 32, 32>}, {pipeline_mode = #tpu.pipeline_mode<synchronous>, transform_indices = @transform_4, window_bounds = array<i64: 32, 64>}, {pipeline_mode = #tpu.pipeline_mode<synchronous>, transform_indices = @transform_5, window_bounds = array<i64: 32, 32>}, {pipeline_mode = #tpu.pipeline_mode<synchronous>, transform_indices = @transform_6, window_bounds = array<i64: 1, 32>}, {pipeline_mode = #tpu.pipeline_mode<synchronous>, transform_indices = @transform_7, window_bounds = array<i64: 1, 32>}, {pipeline_mode = #tpu.pipeline_mode<synchronous>, transform_indices = @transform_8, window_bounds = array<i64: 32, 64>}, {pipeline_mode = #tpu.pipeline_mode<synchronous>, transform_indices = @transform_9, window_bounds = array<i64: 1, 64>}, {pipeline_mode = #tpu.pipeline_mode<synchronous>, transform_indices = @transform_10, window_bounds = array<i64: 64, 32>}, {pipeline_mode = #tpu.pipeline_mode<synchronous>, transform_indices = @transform_11, window_bounds = array<i64: 1, 32>}, {pipeline_mode = #tpu.pipeline_mode<synchronous>, transform_indices = @transform_12, window_bounds = array<i64: 1, 32>}, {pipeline_mode = #tpu.pipeline_mode<synchronous>, transform_indices = @transform_13, window_bounds = array<i64: 1, 32>}, {transform_indices = @transform_14, window_bounds = array<i64: 1, 8, 32>}]} {
    %c0_i32 = arith.constant 0 : i32
    %0 = arith.cmpi eq, %arg2, %c0_i32 : i32
    %1 = arith.extui %0 : i1 to i32
    %c0_i32_0 = arith.constant 0 : i32
    %2 = arith.cmpi ne, %1, %c0_i32_0 : i32
    scf.if %2 {
      %c0_38 = arith.constant 0 : index
      %c0_39 = arith.constant 0 : index
      %c0_40 = arith.constant 0 : index
      %62 = vector.load %arg3[%c0_38, %c0_39, %c0_40] : memref<1x8x32xf32, #tpu.memory_space<vmem>>, vector<1x8x32xf32>
      %63 = vector.shape_cast %62 : vector<1x8x32xf32> to vector<8x32xf32>
      %64 = arith.truncf %63 : vector<8x32xf32> to vector<8x32xbf16>
      %c0_41 = arith.constant 0 : index
      %c0_42 = arith.constant 0 : index
      %65 = vector.load %arg6[%c0_41, %c0_42] : memref<32x32xbf16, #tpu.memory_space<vmem>>, vector<32x32xbf16>
      %cst_43 = arith.constant dense<0.000000e+00> : vector<8x32xf32>
      %66 = tpu.matmul %64, %65, %cst_43 {dimension_numbers = #tpu.dot_dimension_numbers<[1], [0], [0], [1], [0, 0, 1, 1], [], []>} : vector<8x32xbf16>, vector<32x32xbf16>, vector<8x32xf32> -> vector<8x32xf32>
      %cst_44 = arith.constant 0.353553385 : f32
      %67 = vector.broadcast %cst_44 : f32 to vector<8x32xf32>
      %68 = arith.mulf %66, %67 : vector<8x32xf32>
      %69 = vector.extract_strided_slice %68 {offsets = [0, 0], sizes = [8, 8], strides = [1, 1]} : vector<8x32xf32> to vector<8x8xf32>
      %70 = vector.extract_strided_slice %68 {offsets = [0, 8], sizes = [8, 8], strides = [1, 1]} : vector<8x32xf32> to vector<8x8xf32>
      %71 = vector.extract_strided_slice %68 {offsets = [0, 16], sizes = [8, 8], strides = [1, 1]} : vector<8x32xf32> to vector<8x8xf32>
      %72 = vector.extract_strided_slice %68 {offsets = [0, 24], sizes = [8, 8], strides = [1, 1]} : vector<8x32xf32> to vector<8x8xf32>
      %73 = vector.shape_cast %69 : vector<8x8xf32> to vector<1x8x8xf32>
      %74 = vector.shape_cast %70 : vector<8x8xf32> to vector<1x8x8xf32>
      %75 = vector.shape_cast %71 : vector<8x8xf32> to vector<1x8x8xf32>
      %76 = vector.shape_cast %72 : vector<8x8xf32> to vector<1x8x8xf32>
      %77 = tpu.concatenate %73, %74, %75, %76 in 0 : vector<1x8x8xf32>, vector<1x8x8xf32>, vector<1x8x8xf32>, vector<1x8x8xf32> -> vector<4x8x8xf32>
      %78 = arith.truncf %77 : vector<4x8x8xf32> to vector<4x8x8xbf16>
      %c0_45 = arith.constant 0 : index
      %c0_46 = arith.constant 0 : index
      %c0_47 = arith.constant 0 : index
      %79 = vector.load %arg18[%c0_45, %c0_46, %c0_47] : memref<4x8x8xbf16, #tpu.memory_space<vmem>>, vector<4x8x8xbf16>
      tpu.vector_store %arg18[%c0_45, %c0_46, %c0_47], %78 {strides = array<i32>} : memref<4x8x8xbf16, #tpu.memory_space<vmem>>, vector<4x8x8xbf16>,
      %cst_48 = arith.constant 0xFF800000 : f32
      %80 = vector.broadcast %cst_48 : f32 to vector<4x8x1xf32>
      %c0_49 = arith.constant 0 : index
      %c0_50 = arith.constant 0 : index
      %c0_51 = arith.constant 0 : index
      %81 = vector.load %arg19[%c0_49, %c0_50, %c0_51] : memref<4x8x1xf32, #tpu.memory_space<vmem>>, vector<4x8x1xf32>
      tpu.vector_store %arg19[%c0_49, %c0_50, %c0_51], %80 {strides = array<i32>} : memref<4x8x1xf32, #tpu.memory_space<vmem>>, vector<4x8x1xf32>,
      %cst_52 = arith.constant 0.000000e+00 : f32
      %82 = vector.broadcast %cst_52 : f32 to vector<4x8x1xf32>
      %c0_53 = arith.constant 0 : index
      %c0_54 = arith.constant 0 : index
      %c0_55 = arith.constant 0 : index
      %83 = vector.load %arg20[%c0_53, %c0_54, %c0_55] : memref<4x8x1xf32, #tpu.memory_space<vmem>>, vector<4x8x1xf32>
      tpu.vector_store %arg20[%c0_53, %c0_54, %c0_55], %82 {strides = array<i32>} : memref<4x8x1xf32, #tpu.memory_space<vmem>>, vector<4x8x1xf32>,
      %cst_56 = arith.constant 0.000000e+00 : f32
      %84 = vector.broadcast %cst_56 : f32 to vector<4x8x8xf32>
      %c0_57 = arith.constant 0 : index
      %c0_58 = arith.constant 0 : index
      %c0_59 = arith.constant 0 : index
      %85 = vector.load %arg21[%c0_57, %c0_58, %c0_59] : memref<4x8x8xf32, #tpu.memory_space<vmem>>, vector<4x8x8xf32>
      tpu.vector_store %arg21[%c0_57, %c0_58, %c0_59], %84 {strides = array<i32>} : memref<4x8x8xf32, #tpu.memory_space<vmem>>, vector<4x8x8xf32>,
    } else {
    }
    %c0 = arith.constant 0 : index
    %c0_1 = arith.constant 0 : index
    %c0_2 = arith.constant 0 : index
    %3 = vector.load %arg4[%c0, %c0_1, %c0_2] : memref<1x8x32xf32, #tpu.memory_space<vmem>>, vector<1x8x32xf32>
    %4 = vector.shape_cast %3 : vector<1x8x32xf32> to vector<8x32xf32>
    %5 = arith.truncf %4 : vector<8x32xf32> to vector<8x32xbf16>
    %c0_3 = arith.constant 0 : index
    %c0_4 = arith.constant 0 : index
    %6 = vector.load %arg7[%c0_3, %c0_4] : memref<32x64xbf16, #tpu.memory_space<vmem>>, vector<32x64xbf16>
    %cst = arith.constant dense<0.000000e+00> : vector<8x64xf32>
    %7 = tpu.matmul %5, %6, %cst {dimension_numbers = #tpu.dot_dimension_numbers<[1], [0], [0], [1], [0, 0, 1, 1], [], []>} : vector<8x32xbf16>, vector<32x64xbf16>, vector<8x64xf32> -> vector<8x64xf32>
    %8 = vector.extract_strided_slice %7 {offsets = [0, 0], sizes = [8, 8], strides = [1, 1]} : vector<8x64xf32> to vector<8x8xf32>
    %9 = vector.extract_strided_slice %7 {offsets = [0, 8], sizes = [8, 8], strides = [1, 1]} : vector<8x64xf32> to vector<8x8xf32>
    %10 = vector.extract_strided_slice %7 {offsets = [0, 16], sizes = [8, 8], strides = [1, 1]} : vector<8x64xf32> to vector<8x8xf32>
    %11 = vector.extract_strided_slice %7 {offsets = [0, 24], sizes = [8, 8], strides = [1, 1]} : vector<8x64xf32> to vector<8x8xf32>
    %12 = vector.shape_cast %8 : vector<8x8xf32> to vector<1x8x8xf32>
    %13 = vector.shape_cast %9 : vector<8x8xf32> to vector<1x8x8xf32>
    %14 = vector.shape_cast %10 : vector<8x8xf32> to vector<1x8x8xf32>
    %15 = vector.shape_cast %11 : vector<8x8xf32> to vector<1x8x8xf32>
    %16 = tpu.concatenate %12, %13, %14, %15 in 0 : vector<1x8x8xf32>, vector<1x8x8xf32>, vector<1x8x8xf32>, vector<1x8x8xf32> -> vector<4x8x8xf32>
    %17 = arith.truncf %16 : vector<4x8x8xf32> to vector<4x8x8xbf16>
    %18 = vector.extract_strided_slice %7 {offsets = [0, 32], sizes = [8, 8], strides = [1, 1]} : vector<8x64xf32> to vector<8x8xf32>
    %19 = vector.extract_strided_slice %7 {offsets = [0, 40], sizes = [8, 8], strides = [1, 1]} : vector<8x64xf32> to vector<8x8xf32>
    %20 = vector.extract_strided_slice %7 {offsets = [0, 48], sizes = [8, 8], strides = [1, 1]} : vector<8x64xf32> to vector<8x8xf32>
    %21 = vector.extract_strided_slice %7 {offsets = [0, 56], sizes = [8, 8], strides = [1, 1]} : vector<8x64xf32> to vector<8x8xf32>
    %22 = vector.shape_cast %18 : vector<8x8xf32> to vector<1x8x8xf32>
    %23 = vector.shape_cast %19 : vector<8x8xf32> to vector<1x8x8xf32>
    %24 = vector.shape_cast %20 : vector<8x8xf32> to vector<1x8x8xf32>
    %25 = vector.shape_cast %21 : vector<8x8xf32> to vector<1x8x8xf32>
    %26 = tpu.concatenate %22, %23, %24, %25 in 0 : vector<1x8x8xf32>, vector<1x8x8xf32>, vector<1x8x8xf32>, vector<1x8x8xf32> -> vector<4x8x8xf32>
    %27 = arith.truncf %26 : vector<4x8x8xf32> to vector<4x8x8xbf16>
    %c0_5 = arith.constant 0 : index
    %c0_6 = arith.constant 0 : index
    %c0_7 = arith.constant 0 : index
    %28 = vector.load %arg18[%c0_5, %c0_6, %c0_7] : memref<4x8x8xbf16, #tpu.memory_space<vmem>>, vector<4x8x8xbf16>
    "tpu.trace_start"() <{level = 10 : i32, message = "hqd,hkd->hqk"}> : () -> ()
    %cst_8 = arith.constant dense<0.000000e+00> : vector<4x8x8xf32>
    %29 = tpu.matmul %28, %17, %cst_8 {dimension_numbers = #tpu.dot_dimension_numbers<[2], [2], [1], [1], [0, 0, 0, 1, 1, 1], [0], [0]>} : vector<4x8x8xbf16>, vector<4x8x8xbf16>, vector<4x8x8xf32> -> vector<4x8x8xf32>
    "tpu.trace_stop"() : () -> ()
    %c0_9 = arith.constant 0 : index
    %c0_10 = arith.constant 0 : index
    %c0_11 = arith.constant 0 : index
    %30 = vector.load %arg5[%c0_9, %c0_10, %c0_11] : memref<1x1x8xf32, #tpu.memory_space<vmem>>, vector<1x1x8xf32>
    %31 = vector.shape_cast %30 : vector<1x1x8xf32> to vector<1x8xf32>
    %32 = vector.shape_cast %31 : vector<1x8xf32> to vector<1x1x8xf32>
    %33 = vector.broadcast %32 : vector<1x1x8xf32> to vector<4x8x8xf32>
    %34 = arith.addf %29, %33 : vector<4x8x8xf32>
    %c0_12 = arith.constant 0 : index
    %c0_13 = arith.constant 0 : index
    %c0_14 = arith.constant 0 : index
    %35 = vector.load %arg19[%c0_12, %c0_13, %c0_14] : memref<4x8x1xf32, #tpu.memory_space<vmem>>, vector<4x8x1xf32>
    %cst_15 = arith.constant dense<0xFF800000> : vector<4x8xf32>
    %36 = vector.multi_reduction <maximumf>, %34, %cst_15 [2] : vector<4x8x8xf32> to vector<4x8xf32>
    %37 = vector.shape_cast %36 : vector<4x8xf32> to vector<4x8x1xf32>
    %38 = arith.maximumf %35, %37 : vector<4x8x1xf32>
    %c0_16 = arith.constant 0 : index
    %c0_17 = arith.constant 0 : index
    %c0_18 = arith.constant 0 : index
    %39 = vector.load %arg19[%c0_16, %c0_17, %c0_18] : memref<4x8x1xf32, #tpu.memory_space<vmem>>, vector<4x8x1xf32>
    %40 = arith.subf %39, %38 : vector<4x8x1xf32>
    %41 = math.exp %40 : vector<4x8x1xf32>
    %42 = vector.broadcast %38 : vector<4x8x1xf32> to vector<4x8x8xf32>
    %43 = arith.subf %34, %42 : vector<4x8x8xf32>
    %44 = math.exp %43 : vector<4x8x8xf32>
    %c0_19 = arith.constant 0 : index
    %c0_20 = arith.constant 0 : index
    %c0_21 = arith.constant 0 : index
    %45 = vector.load %arg20[%c0_19, %c0_20, %c0_21] : memref<4x8x1xf32, #tpu.memory_space<vmem>>, vector<4x8x1xf32>
    %46 = arith.mulf %41, %45 : vector<4x8x1xf32>
    %cst_22 = arith.constant dense<0.000000e+00> : vector<4x8xf32>
    %47 = vector.multi_reduction <add>, %44, %cst_22 [2] : vector<4x8x8xf32> to vector<4x8xf32>
    %48 = vector.shape_cast %47 : vector<4x8xf32> to vector<4x8x1xf32>
    %49 = arith.addf %46, %48 : vector<4x8x1xf32>
    %c0_23 = arith.constant 0 : index
    %c0_24 = arith.constant 0 : index
    %c0_25 = arith.constant 0 : index
    %50 = vector.load %arg20[%c0_23, %c0_24, %c0_25] : memref<4x8x1xf32, #tpu.memory_space<vmem>>, vector<4x8x1xf32>
    tpu.vector_store %arg20[%c0_23, %c0_24, %c0_25], %49 {strides = array<i32>} : memref<4x8x1xf32, #tpu.memory_space<vmem>>, vector<4x8x1xf32>,
    %c0_26 = arith.constant 0 : index
    %c0_27 = arith.constant 0 : index
    %c0_28 = arith.constant 0 : index
    %51 = vector.load %arg21[%c0_26, %c0_27, %c0_28] : memref<4x8x8xf32, #tpu.memory_space<vmem>>, vector<4x8x8xf32>
    %52 = vector.broadcast %41 : vector<4x8x1xf32> to vector<4x8x8xf32>
    %53 = arith.mulf %52, %51 : vector<4x8x8xf32>
    %54 = arith.truncf %44 : vector<4x8x8xf32> to vector<4x8x8xbf16>
    "tpu.trace_start"() <{level = 10 : i32, message = "hqk,hkd->hqd"}> : () -> ()
    %cst_29 = arith.constant dense<0.000000e+00> : vector<4x8x8xf32>
    %55 = tpu.matmul %54, %27, %cst_29 {dimension_numbers = #tpu.dot_dimension_numbers<[2], [1], [1], [2], [0, 0, 0, 1, 1, 2], [0], [0]>} : vector<4x8x8xbf16>, vector<4x8x8xbf16>, vector<4x8x8xf32> -> vector<4x8x8xf32>
    "tpu.trace_stop"() : () -> ()
    %56 = arith.addf %53, %55 : vector<4x8x8xf32>
    %c0_30 = arith.constant 0 : index
    %c0_31 = arith.constant 0 : index
    %c0_32 = arith.constant 0 : index
    %57 = vector.load %arg21[%c0_30, %c0_31, %c0_32] : memref<4x8x8xf32, #tpu.memory_space<vmem>>, vector<4x8x8xf32>
    tpu.vector_store %arg21[%c0_30, %c0_31, %c0_32], %56 {strides = array<i32>} : memref<4x8x8xf32, #tpu.memory_space<vmem>>, vector<4x8x8xf32>,
    %c0_33 = arith.constant 0 : index
    %c0_34 = arith.constant 0 : index
    %c0_35 = arith.constant 0 : index
    %58 = vector.load %arg19[%c0_33, %c0_34, %c0_35] : memref<4x8x1xf32, #tpu.memory_space<vmem>>, vector<4x8x1xf32>
    tpu.vector_store %arg19[%c0_33, %c0_34, %c0_35], %38 {strides = array<i32>} : memref<4x8x1xf32, #tpu.memory_space<vmem>>, vector<4x8x1xf32>,
    %c0_i32_36 = arith.constant 0 : i32
    %59 = arith.cmpi eq, %arg2, %c0_i32_36 : i32
    %60 = arith.extui %59 : i1 to i32
    %c0_i32_37 = arith.constant 0 : i32
    %61 = arith.cmpi ne, %60, %c0_i32_37 : i32
    scf.if %61 {
      %c0_38 = arith.constant 0 : index
      %c0_39 = arith.constant 0 : index
      %c0_40 = arith.constant 0 : index
      %62 = vector.load %arg3[%c0_38, %c0_39, %c0_40] : memref<1x8x32xf32, #tpu.memory_space<vmem>>, vector<1x8x32xf32>
      %63 = vector.shape_cast %62 : vector<1x8x32xf32> to vector<8x32xf32>
      %c0_41 = arith.constant 0 : index
      %c0_42 = arith.constant 0 : index
      %c0_43 = arith.constant 0 : index
      %64 = vector.load %arg20[%c0_41, %c0_42, %c0_43] : memref<4x8x1xf32, #tpu.memory_space<vmem>>, vector<4x8x1xf32>
      %cst_44 = arith.constant 9.99999968E-21 : f32
      %65 = vector.broadcast %cst_44 : f32 to vector<4x8x1xf32>
      %66 = arith.maximumf %64, %65 : vector<4x8x1xf32>
      %67 = tpu.reciprocal %66 {approx = true} : vector<4x8x1xf32> -> vector<4x8x1xf32>
      %c0_45 = arith.constant 0 : index
      %c0_46 = arith.constant 0 : index
      %c0_47 = arith.constant 0 : index
      %68 = vector.load %arg21[%c0_45, %c0_46, %c0_47] : memref<4x8x8xf32, #tpu.memory_space<vmem>>, vector<4x8x8xf32>
      %69 = vector.broadcast %67 : vector<4x8x1xf32> to vector<4x8x8xf32>
      %70 = arith.mulf %68, %69 : vector<4x8x8xf32>
      %71 = vector.extract_strided_slice %70 {offsets = [0, 0, 0], sizes = [1, 8, 8], strides = [1, 1, 1]} : vector<4x8x8xf32> to vector<1x8x8xf32>
      %72 = vector.shape_cast %71 : vector<1x8x8xf32> to vector<8x8xf32>
      %73 = vector.extract_strided_slice %70 {offsets = [1, 0, 0], sizes = [1, 8, 8], strides = [1, 1, 1]} : vector<4x8x8xf32> to vector<1x8x8xf32>
      %74 = vector.shape_cast %73 : vector<1x8x8xf32> to vector<8x8xf32>
      %75 = vector.extract_strided_slice %70 {offsets = [2, 0, 0], sizes = [1, 8, 8], strides = [1, 1, 1]} : vector<4x8x8xf32> to vector<1x8x8xf32>
      %76 = vector.shape_cast %75 : vector<1x8x8xf32> to vector<8x8xf32>
      %77 = vector.extract_strided_slice %70 {offsets = [3, 0, 0], sizes = [1, 8, 8], strides = [1, 1, 1]} : vector<4x8x8xf32> to vector<1x8x8xf32>
      %78 = vector.shape_cast %77 : vector<1x8x8xf32> to vector<8x8xf32>
      %79 = tpu.concatenate %72, %74, %76, %78 in 1 : vector<8x8xf32>, vector<8x8xf32>, vector<8x8xf32>, vector<8x8xf32> -> vector<8x32xf32>
      %80 = arith.truncf %79 : vector<8x32xf32> to vector<8x32xbf16>
      %c0_48 = arith.constant 0 : index
      %c0_49 = arith.constant 0 : index
      %81 = vector.load %arg8[%c0_48, %c0_49] : memref<32x32xbf16, #tpu.memory_space<vmem>>, vector<32x32xbf16>
      %cst_50 = arith.constant dense<0.000000e+00> : vector<8x32xf32>
      %82 = tpu.matmul %80, %81, %cst_50 {dimension_numbers = #tpu.dot_dimension_numbers<[1], [0], [0], [1], [0, 0, 1, 1], [], []>} : vector<8x32xbf16>, vector<32x32xbf16>, vector<8x32xf32> -> vector<8x32xf32>
      %c0_51 = arith.constant 0 : index
      %c0_52 = arith.constant 0 : index
      %83 = vector.load %arg9[%c0_51, %c0_52] : memref<1x32xf32, #tpu.memory_space<vmem>>, vector<1x32xf32>
      %c0_53 = arith.constant 0 : index
      %c0_54 = arith.constant 0 : index
      %84 = vector.load %arg10[%c0_53, %c0_54] : memref<1x32xf32, #tpu.memory_space<vmem>>, vector<1x32xf32>
      %cst_55 = arith.constant dense<0.000000e+00> : vector<8xf32>
      %85 = vector.multi_reduction <add>, %82, %cst_55 [1] : vector<8x32xf32> to vector<8xf32>
      %86 = vector.shape_cast %85 : vector<8xf32> to vector<8x1xf32>
      %cst_56 = arith.constant 3.200000e+01 : f32
      %87 = vector.broadcast %cst_56 : f32 to vector<8x1xf32>
      %88 = arith.divf %86, %87 : vector<8x1xf32>
      %89 = vector.broadcast %88 : vector<8x1xf32> to vector<8x32xf32>
      %90 = arith.subf %82, %89 : vector<8x32xf32>
      %91 = arith.mulf %90, %90 : vector<8x32xf32>
      %cst_57 = arith.constant dense<0.000000e+00> : vector<8xf32>
      %92 = vector.multi_reduction <add>, %91, %cst_57 [1] : vector<8x32xf32> to vector<8xf32>
      %93 = vector.shape_cast %92 : vector<8xf32> to vector<8x1xf32>
      %cst_58 = arith.constant 3.200000e+01 : f32
      %94 = vector.broadcast %cst_58 : f32 to vector<8x1xf32>
      %95 = arith.divf %93, %94 : vector<8x1xf32>
      %96 = vector.broadcast %88 : vector<8x1xf32> to vector<8x32xf32>
      %97 = arith.subf %82, %96 : vector<8x32xf32>
      %cst_59 = arith.constant 9.99999974E-6 : f32
      %98 = vector.broadcast %cst_59 : f32 to vector<8x1xf32>
      %99 = arith.addf %95, %98 : vector<8x1xf32>
      %100 = math.rsqrt %99 : vector<8x1xf32>
      %101 = vector.broadcast %100 : vector<8x1xf32> to vector<8x32xf32>
      %102 = arith.mulf %97, %101 : vector<8x32xf32>
      %103 = vector.broadcast %83 : vector<1x32xf32> to vector<8x32xf32>
      %104 = arith.mulf %102, %103 : vector<8x32xf32>
      %105 = vector.broadcast %84 : vector<1x32xf32> to vector<8x32xf32>
      %106 = arith.addf %104, %105 : vector<8x32xf32>
      %107 = arith.addf %106, %63 : vector<8x32xf32>
      %108 = arith.truncf %107 : vector<8x32xf32> to vector<8x32xbf16>
      %c0_60 = arith.constant 0 : index
      %c0_61 = arith.constant 0 : index
      %109 = vector.load %arg11[%c0_60, %c0_61] : memref<32x64xbf16, #tpu.memory_space<vmem>>, vector<32x64xbf16>
      %cst_62 = arith.constant dense<0.000000e+00> : vector<8x64xf32>
      %110 = tpu.matmul %108, %109, %cst_62 {dimension_numbers = #tpu.dot_dimension_numbers<[1], [0], [0], [1], [0, 0, 1, 1], [], []>} : vector<8x32xbf16>, vector<32x64xbf16>, vector<8x64xf32> -> vector<8x64xf32>
      %c0_63 = arith.constant 0 : index
      %c0_64 = arith.constant 0 : index
      %111 = vector.load %arg12[%c0_63, %c0_64] : memref<1x64xf32, #tpu.memory_space<vmem>>, vector<1x64xf32>
      %112 = vector.broadcast %111 : vector<1x64xf32> to vector<8x64xf32>
      %113 = arith.addf %110, %112 : vector<8x64xf32>
      %cst_65 = arith.constant 0.000000e+00 : f32
      %114 = vector.broadcast %cst_65 : f32 to vector<8x64xf32>
      %115 = arith.maximumf %113, %114 : vector<8x64xf32>
      %116 = arith.truncf %115 : vector<8x64xf32> to vector<8x64xbf16>
      %c0_66 = arith.constant 0 : index
      %c0_67 = arith.constant 0 : index
      %117 = vector.load %arg13[%c0_66, %c0_67] : memref<64x32xbf16, #tpu.memory_space<vmem>>, vector<64x32xbf16>
      %cst_68 = arith.constant dense<0.000000e+00> : vector<8x32xf32>
      %118 = tpu.matmul %116, %117, %cst_68 {dimension_numbers = #tpu.dot_dimension_numbers<[1], [0], [0], [1], [0, 0, 1, 1], [], []>} : vector<8x64xbf16>, vector<64x32xbf16>, vector<8x32xf32> -> vector<8x32xf32>
      %c0_69 = arith.constant 0 : index
      %c0_70 = arith.constant 0 : index
      %119 = vector.load %arg14[%c0_69, %c0_70] : memref<1x32xf32, #tpu.memory_space<vmem>>, vector<1x32xf32>
      %120 = vector.broadcast %119 : vector<1x32xf32> to vector<8x32xf32>
      %121 = arith.addf %118, %120 : vector<8x32xf32>
      %c0_71 = arith.constant 0 : index
      %c0_72 = arith.constant 0 : index
      %122 = vector.load %arg15[%c0_71, %c0_72] : memref<1x32xf32, #tpu.memory_space<vmem>>, vector<1x32xf32>
      %c0_73 = arith.constant 0 : index
      %c0_74 = arith.constant 0 : index
      %123 = vector.load %arg16[%c0_73, %c0_74] : memref<1x32xf32, #tpu.memory_space<vmem>>, vector<1x32xf32>
      %cst_75 = arith.constant dense<0.000000e+00> : vector<8xf32>
      %124 = vector.multi_reduction <add>, %121, %cst_75 [1] : vector<8x32xf32> to vector<8xf32>
      %125 = vector.shape_cast %124 : vector<8xf32> to vector<8x1xf32>
      %cst_76 = arith.constant 3.200000e+01 : f32
      %126 = vector.broadcast %cst_76 : f32 to vector<8x1xf32>
      %127 = arith.divf %125, %126 : vector<8x1xf32>
      %128 = vector.broadcast %127 : vector<8x1xf32> to vector<8x32xf32>
      %129 = arith.subf %121, %128 : vector<8x32xf32>
      %130 = arith.mulf %129, %129 : vector<8x32xf32>
      %cst_77 = arith.constant dense<0.000000e+00> : vector<8xf32>
      %131 = vector.multi_reduction <add>, %130, %cst_77 [1] : vector<8x32xf32> to vector<8xf32>
      %132 = vector.shape_cast %131 : vector<8xf32> to vector<8x1xf32>
      %cst_78 = arith.constant 3.200000e+01 : f32
      %133 = vector.broadcast %cst_78 : f32 to vector<8x1xf32>
      %134 = arith.divf %132, %133 : vector<8x1xf32>
      %135 = vector.broadcast %127 : vector<8x1xf32> to vector<8x32xf32>
      %136 = arith.subf %121, %135 : vector<8x32xf32>
      %cst_79 = arith.constant 9.99999974E-6 : f32
      %137 = vector.broadcast %cst_79 : f32 to vector<8x1xf32>
      %138 = arith.addf %134, %137 : vector<8x1xf32>
      %139 = math.rsqrt %138 : vector<8x1xf32>
      %140 = vector.broadcast %139 : vector<8x1xf32> to vector<8x32xf32>
      %141 = arith.mulf %136, %140 : vector<8x32xf32>
      %142 = vector.broadcast %122 : vector<1x32xf32> to vector<8x32xf32>
      %143 = arith.mulf %141, %142 : vector<8x32xf32>
      %144 = vector.broadcast %123 : vector<1x32xf32> to vector<8x32xf32>
      %145 = arith.addf %143, %144 : vector<8x32xf32>
      %146 = arith.addf %145, %107 : vector<8x32xf32>
      %c0_80 = arith.constant 0 : index
      %c0_81 = arith.constant 0 : index
      %c0_82 = arith.constant 0 : index
      %147 = vector.load %arg17[%c0_80, %c0_81, %c0_82] : memref<1x8x32xf32, #tpu.memory_space<vmem>>, vector<1x8x32xf32>
      %148 = vector.shape_cast %147 : vector<1x8x32xf32> to vector<8x32xf32>
      %149 = vector.shape_cast %146 : vector<8x32xf32> to vector<1x8x32xf32>
      tpu.vector_store %arg17[%c0_80, %c0_81, %c0_82], %149 {strides = array<i32>} : memref<1x8x32xf32, #tpu.memory_space<vmem>>, vector<1x8x32xf32>,
    } else {
    }
    return
  }
  func.func @transform_0(%arg0: i32, %arg1: i32, %arg2: i32) -> (i32, i32, i32) {
    %c0_i32 = arith.constant 0 : i32
    %c0_i32_0 = arith.constant 0 : i32
    return %arg0, %arg1, %c0_i32 : i32, i32, i32
  }
  func.func @transform_1(%arg0: i32, %arg1: i32, %arg2: i32) -> (i32, i32, i32) {
    %c0_i32 = arith.constant 0 : i32
    %c0_i32_0 = arith.constant 0 : i32
    return %arg0, %arg2, %c0_i32 : i32, i32, i32
  }
  func.func @transform_2(%arg0: i32, %arg1: i32, %arg2: i32) -> (i32, i32, i32) {
    %c0_i32 = arith.constant 0 : i32
    %c0_i32_0 = arith.constant 0 : i32
    return %arg0, %c0_i32, %arg2 : i32, i32, i32
  }
  func.func @transform_3(%arg0: i32, %arg1: i32, %arg2: i32) -> (i32, i32) {
    %c0_i32 = arith.constant 0 : i32
    %c0_i32_0 = arith.constant 0 : i32
    %c0_i32_1 = arith.constant 0 : i32
    return %c0_i32, %c0_i32_0 : i32, i32
  }
  func.func @transform_4(%arg0: i32, %arg1: i32, %arg2: i32) -> (i32, i32) {
    %c0_i32 = arith.constant 0 : i32
    %c0_i32_0 = arith.constant 0 : i32
    %c0_i32_1 = arith.constant 0 : i32
    return %c0_i32, %c0_i32_0 : i32, i32
  }
  func.func @transform_5(%arg0: i32, %arg1: i32, %arg2: i32) -> (i32, i32) {
    %c0_i32 = arith.constant 0 : i32
    %c0_i32_0 = arith.constant 0 : i32
    %c0_i32_1 = arith.constant 0 : i32
    return %c0_i32, %c0_i32_0 : i32, i32
  }
  func.func @transform_6(%arg0: i32, %arg1: i32, %arg2: i32) -> (i32, i32) {
    %c0_i32 = arith.constant 0 : i32
    %c0_i32_0 = arith.constant 0 : i32
    %c0_i32_1 = arith.constant 0 : i32
    return %c0_i32, %c0_i32_0 : i32, i32
  }
  func.func @transform_7(%arg0: i32, %arg1: i32, %arg2: i32) -> (i32, i32) {
    %c0_i32 = arith.constant 0 : i32
    %c0_i32_0 = arith.constant 0 : i32
    %c0_i32_1 = arith.constant 0 : i32
    return %c0_i32, %c0_i32_0 : i32, i32
  }
  func.func @transform_8(%arg0: i32, %arg1: i32, %arg2: i32) -> (i32, i32) {
    %c0_i32 = arith.constant 0 : i32
    %c0_i32_0 = arith.constant 0 : i32
    %c0_i32_1 = arith.constant 0 : i32
    return %c0_i32, %c0_i32_0 : i32, i32
  }
  func.func @transform_9(%arg0: i32, %arg1: i32, %arg2: i32) -> (i32, i32) {
    %c0_i32 = arith.constant 0 : i32
    %c0_i32_0 = arith.constant 0 : i32
    %c0_i32_1 = arith.constant 0 : i32
    return %c0_i32, %c0_i32_0 : i32, i32
  }
  func.func @transform_10(%arg0: i32, %arg1: i32, %arg2: i32) -> (i32, i32) {
    %c0_i32 = arith.constant 0 : i32
    %c0_i32_0 = arith.constant 0 : i32
    %c0_i32_1 = arith.constant 0 : i32
    return %c0_i32, %c0_i32_0 : i32, i32
  }
  func.func @transform_11(%arg0: i32, %arg1: i32, %arg2: i32) -> (i32, i32) {
    %c0_i32 = arith.constant 0 : i32
    %c0_i32_0 = arith.constant 0 : i32
    %c0_i32_1 = arith.constant 0 : i32
    return %c0_i32, %c0_i32_0 : i32, i32
  }
  func.func @transform_12(%arg0: i32, %arg1: i32, %arg2: i32) -> (i32, i32) {
    %c0_i32 = arith.constant 0 : i32
    %c0_i32_0 = arith.constant 0 : i32
    %c0_i32_1 = arith.constant 0 : i32
    return %c0_i32, %c0_i32_0 : i32, i32
  }
  func.func @transform_13(%arg0: i32, %arg1: i32, %arg2: i32) -> (i32, i32) {
    %c0_i32 = arith.constant 0 : i32
    %c0_i32_0 = arith.constant 0 : i32
    %c0_i32_1 = arith.constant 0 : i32
    return %c0_i32, %c0_i32_0 : i32, i32
  }
  func.func @transform_14(%arg0: i32, %arg1: i32, %arg2: i32) -> (i32, i32, i32) {
    %c0_i32 = arith.constant 0 : i32
    %c0_i32_0 = arith.constant 0 : i32
    return %arg0, %arg1, %c0_i32 : i32, i32, i32
  }
}

</mosaic_0001>

<llo_original>
// kernel: tpu_custom_call.1
$region0: #{tpu_custom_call.1}
  #allocation0 [shape = 'u32[]', space=smem, size = 0x4, offset = 0x4, fixed_abs, tag = 'smem constant byte address 0x4 - core index']
  #allocation1 [shape = 'u32[144,128]{1,0:T(1,128)}', space=vmem, size = 0x12000, scoped, tag = 'internal scratch']
  #allocation2 [shape = 'bf16[4,8,8]{2,1,0:T(8,128)(2,1)}', space=vmem, size = 0x2000, scoped, tag = 'scratch operand']
  #allocation3 [shape = 'f32[4,8,1]{2,1,0:T(8,128)}', space=vmem, size = 0x4000, scoped, tag = 'scratch operand']
  #allocation4 [shape = 'f32[4,8,1]{2,1,0:T(8,128)}', space=vmem, size = 0x4000, scoped, tag = 'scratch operand']
  #allocation5 [shape = 'f32[4,8,8]{2,1,0:T(8,128)}', space=vmem, size = 0x4000, scoped, tag = 'scratch operand']
  %s0 = inlined_call_operand.vmem [shape: f32[2,8,32], index: 0, kind: input, shape index: {}]
  %s1 = inlined_call_operand.vmem [shape: f32[2,8,32], index: 1, kind: input, shape index: {}]
  %s2 = inlined_call_operand.vmem [shape: f32[2,1,8], index: 2, kind: input, shape index: {}]
  %s3 = inlined_call_operand.vmem [shape: bf16[32,32], index: 3, kind: input, shape index: {}]
  %s4 = inlined_call_operand.hbm [shape: bf16[32,64], index: 4, kind: input, shape index: {}]
  %s5 = inlined_call_operand.hbm [shape: bf16[32,32], index: 5, kind: input, shape index: {}]
  %s6 = inlined_call_operand.vmem [shape: f32[1,32], index: 6, kind: input, shape index: {}]
  %s7 = inlined_call_operand.vmem [shape: f32[1,32], index: 7, kind: input, shape index: {}]
  %s8 = inlined_call_operand.hbm [shape: bf16[32,64], index: 8, kind: input, shape index: {}]
  %s9 = inlined_call_operand.vmem [shape: f32[1,64], index: 9, kind: input, shape index: {}]
  %s10 = inlined_call_operand.vmem [shape: bf16[64,32], index: 10, kind: input, shape index: {}]
  %s11 = inlined_call_operand.vmem [shape: f32[1,32], index: 11, kind: input, shape index: {}]
  %s12 = inlined_call_operand.vmem [shape: f32[1,32], index: 12, kind: input, shape index: {}]
  %s13 = inlined_call_operand.vmem [shape: f32[1,32], index: 13, kind: input, shape index: {}]
  %s14 = inlined_call_operand.hbm [shape: f32[2,8,32], index: 14, kind: output, shape index: {}]
  %s15 = sld [smem:[#allocation0]]
  $region109: #{tpu_custom_call.1} parent=0
    _
  %s17 = ssub.s32 1, %s15
  %s18 = scalar_select 0, %s17, %s15
  $region1: #{tpu_custom_call.1} parent=0
    #allocation6 [shape = 'u8[8192]{0}', space=vmem, size = 0x2000, scoped, tag = 'input window, operand 4, single buffered']
    #allocation7 [shape = 's32[2]{0}', space=sflag, size = 0x8, scoped, tag = 'scoped memory for tpu_custom_call.1']
    #allocation8 [shape = 's32[2]{0}', space=sflag, size = 0x8, scoped, tag = 'scoped memory for tpu_custom_call.1']
    #allocation9 [shape = 'u8[8192]{0}', space=vmem, size = 0x2000, scoped, tag = 'input window, operand 5, single buffered']
    #allocation10 [shape = 's32[1]{0}', space=sflag, size = 0x4, scoped, tag = 'scoped memory for tpu_custom_call.1']
    #allocation11 [shape = 'u8[8192]{0}', space=vmem, size = 0x2000, scoped, tag = 'input window, operand 8, single buffered']
    #allocation12 [shape = 'u8[8192]{0}', space=vmem, size = 0x2000, scoped, tag = 'output window, operand 0']
    %19 = vsyncpa [#allocation7], 0
    %20 = vsyncpa [#allocation10], 0
    %21 = vsyncpa [#allocation8], 0
    %s22 = scalar_lea.sflag [#allocation8], 1
    %23 = vsyncpa %s22, 0
    loop: start=0, step=1, limit=4
    $region2: #{tpu_custom_call.1} parent=1 // loop_pre_header
      _
    $region3: #{tpu_custom_call.1} parent=1 // loop_header
      %s25 = sphi 0, %s29
      %p26 = scmp.ge.s32.totalorder %s25, 4
      %s32 = sphi 0, %s51
      %s33 = sphi 0, %s47
      %s34 = sphi 0, %s43
      %s35 = sphi 0, %s32
      %s36 = sphi 0, %s33
      %s37 = sphi 0, %s34
      %s38 = sphi 0, %s35
      %s39 = sphi 0, %s36
      %s40 = sphi 0, %s37
      %s56 = sphi 0, %s58
      %s59 = sphi 0, %s56
      %s60 = sphi 0, %s59
      %s76 = sphi 0, %s60
      %s84 = sphi 0, %s86
      %s87 = sphi 0, %s84
      %s88 = sphi 0, %s87
      %s104 = sphi 0, %s88
      %s112 = sphi 0, %s114
      %s115 = sphi 0, %s112
      %s116 = sphi 0, %s115
      %s132 = sphi 0, %s116
      %s136 = sphi 0, %s136
      %s138 = sphi 0, %s136
      %s139 = sphi 0, %s138
      %s153 = sphi 0, %s139
      %s157 = sphi 0, %s157
      %s159 = sphi 0, %s157
      %s160 = sphi 0, %s159
      %s174 = sphi 0, %s160
      %s178 = sphi 0, %s178
      %s180 = sphi 0, %s178
      %s181 = sphi 0, %s180
      %s195 = sphi 0, %s181
      %s199 = sphi 0, %s199
      %s201 = sphi 0, %s199
      %s202 = sphi 0, %s201
      %s216 = sphi 0, %s202
      %s220 = sphi 0, %s220
      %s222 = sphi 0, %s220
      %s223 = sphi 0, %s222
      %s237 = sphi 0, %s223
      %s241 = sphi 0, %s241
      %s243 = sphi 0, %s241
      %s244 = sphi 0, %s243
      %s258 = sphi 0, %s244
      %s262 = sphi 0, %s262
      %s264 = sphi 0, %s262
      %s265 = sphi 0, %s264
      %s279 = sphi 0, %s265
      %s283 = sphi 0, %s283
      %s285 = sphi 0, %s283
      %s286 = sphi 0, %s285
      %s300 = sphi 0, %s286
      %s304 = sphi 0, %s304
      %s306 = sphi 0, %s304
      %s307 = sphi 0, %s306
      %s321 = sphi 0, %s307
      %s325 = sphi 0, %s325
      %s327 = sphi 0, %s325
      %s328 = sphi 0, %s327
      %s342 = sphi 0, %s328
      %s346 = sphi 0, %s346
      %s348 = sphi 0, %s346
      %s349 = sphi 0, %s348
      %s363 = sphi 0, %s349
      %s371 = sphi 0, %s373
      %s374 = sphi 0, %s371
      %s375 = sphi 0, %s374
      %s391 = sphi 0, %s375
    $region4: #{tpu_custom_call.1} parent=1 // loop_header_branch
      %28 = sbr.rel (%p26) target = $region8
    $region5: #{tpu_custom_call.1} parent=1 // loop_body
      %s30 = ssub.s32 %s25, 1
      %s31 = ssub.s32 %s25, 2
      %s41 = sadd.s32 1, %s34
      %p42 = scmp.ge.s32.totalorder %s41, 1
      %s43 = scalar_select %p42, 0, %s41
      %s44 = sadd.s32 1, %s33
      %s45 = scalar_select %p42, %s44, %s33
      %p46 = scmp.ge.s32.totalorder %s45, 1
      %s47 = scalar_select %p46, 0, %s45
      %s48 = sadd.s32 1, %s32
      %s49 = scalar_select %p46, %s48, %s32
      %p50 = scmp.ge.s32.totalorder %s49, 2
      %s51 = scalar_select %p50, 0, %s49
      %s52 = ssub.s32 %s32, %s51
      %s53 = ssub.s32 %s33, %s47
      %s54 = sor.u32 %s52, %s53
      %p55 = scmp.eq.s32.totalorder %s54, 0
      %s57 = sadd.s32 %s56, 1
      %s58 = scalar_select %p55, %s56, %s57
      %p61 = pneg %p55
      %p62 = scmp.eq.s32.totalorder %s25, 1
      %p63 = por %p61, %p62
      %p64 = scmp.ne.s32.totalorder %s56, %s59
      %p65 = scmp.eq.s32.totalorder %s25, 0
      %p66 = por %p64, %p65
      %p67 = scmp.ne.s32.totalorder %s56, %s59
      %p68 = scmp.eq.s32.totalorder %s30, 1
      %p69 = por %p67, %p68
      %p70 = scmp.ne.s32.totalorder %s59, %s60
      %p71 = scmp.eq.s32.totalorder %s30, 0
      %p72 = por %p70, %p71
      %p73 = scmp.ne.s32.totalorder %s59, %s60
      %p74 = scmp.eq.s32.totalorder %s31, 1
      %p75 = por %p73, %p74
      %p77 = scmp.ne.s32.totalorder %s60, %s76
      %p78 = scmp.eq.s32.totalorder %s31, 0
      %p79 = por %p77, %p78
      %s80 = ssub.s32 %s32, %s51
      %s81 = ssub.s32 %s34, %s43
      %s82 = sor.u32 %s80, %s81
      %p83 = scmp.eq.s32.totalorder %s82, 0
      %s85 = sadd.s32 %s84, 1
      %s86 = scalar_select %p83, %s84, %s85
      %p89 = pneg %p83
      %p90 = scmp.eq.s32.totalorder %s25, 1
      %p91 = por %p89, %p90
      %p92 = scmp.ne.s32.totalorder %s84, %s87
      %p93 = scmp.eq.s32.totalorder %s25, 0
      %p94 = por %p92, %p93
      %p95 = scmp.ne.s32.totalorder %s84, %s87
      %p96 = scmp.eq.s32.totalorder %s30, 1
      %p97 = por %p95, %p96
      %p98 = scmp.ne.s32.totalorder %s87, %s88
      %p99 = scmp.eq.s32.totalorder %s30, 0
      %p100 = por %p98, %p99
      %p101 = scmp.ne.s32.totalorder %s87, %s88
      %p102 = scmp.eq.s32.totalorder %s31, 1
      %p103 = por %p101, %p102
      %p105 = scmp.ne.s32.totalorder %s88, %s104
      %p106 = scmp.eq.s32.totalorder %s31, 0
      %p107 = por %p105, %p106
      %s108 = ssub.s32 %s32, %s51
      %s109 = ssub.s32 %s34, %s43
      %s110 = sor.u32 %s108, %s109
      %p111 = scmp.eq.s32.totalorder %s110, 0
      %s113 = sadd.s32 %s112, 1
      %s114 = scalar_select %p111, %s112, %s113
      %p117 = pneg %p111
      %p118 = scmp.eq.s32.totalorder %s25, 1
      %p119 = por %p117, %p118
      %p120 = scmp.ne.s32.totalorder %s112, %s115
      %p121 = scmp.eq.s32.totalorder %s25, 0
      %p122 = por %p120, %p121
      %p123 = scmp.ne.s32.totalorder %s112, %s115
      %p124 = scmp.eq.s32.totalorder %s30, 1
      %p125 = por %p123, %p124
      %p126 = scmp.ne.s32.totalorder %s115, %s116
      %p127 = scmp.eq.s32.totalorder %s30, 0
      %p128 = por %p126, %p127
      %p129 = scmp.ne.s32.totalorder %s115, %s116
      %p130 = scmp.eq.s32.totalorder %s31, 1
      %p131 = por %p129, %p130
      %p133 = scmp.ne.s32.totalorder %s116, %s132
      %p134 = scmp.eq.s32.totalorder %s31, 0
      %p135 = por %p133, %p134
      %s137 = sadd.s32 %s136, 1
      %p140 = scmp.eq.s32.totalorder %s25, 1
      %p141 = scmp.ne.s32.totalorder %s136, %s138
      %p142 = scmp.eq.s32.totalorder %s25, 0
      %p143 = por %p141, %p142
      %p144 = scmp.ne.s32.totalorder %s136, %s138
      %p145 = scmp.eq.s32.totalorder %s30, 1
      %p146 = por %p144, %p145
      %p147 = scmp.ne.s32.totalorder %s138, %s139
      %p148 = scmp.eq.s32.totalorder %s30, 0
      %p149 = por %p147, %p148
      %p150 = scmp.ne.s32.totalorder %s138, %s139
      %p151 = scmp.eq.s32.totalorder %s31, 1
      %p152 = por %p150, %p151
      %p154 = scmp.ne.s32.totalorder %s139, %s153
      %p155 = scmp.eq.s32.totalorder %s31, 0
      %p156 = por %p154, %p155
      %s158 = sadd.s32 %s157, 1
      %p161 = scmp.eq.s32.totalorder %s25, 1
      %p162 = scmp.ne.s32.totalorder %s157, %s159
      %p163 = scmp.eq.s32.totalorder %s25, 0
      %p164 = por %p162, %p163
      %p165 = scmp.ne.s32.totalorder %s157, %s159
      %p166 = scmp.eq.s32.totalorder %s30, 1
      %p167 = por %p165, %p166
      %p168 = scmp.ne.s32.totalorder %s159, %s160
      %p169 = scmp.eq.s32.totalorder %s30, 0
      %p170 = por %p168, %p169
      %p171 = scmp.ne.s32.totalorder %s159, %s160
      %p172 = scmp.eq.s32.totalorder %s31, 1
      %p173 = por %p171, %p172
      %p175 = scmp.ne.s32.totalorder %s160, %s174
      %p176 = scmp.eq.s32.totalorder %s31, 0
      %p177 = por %p175, %p176
      %s179 = sadd.s32 %s178, 1
      %p182 = scmp.eq.s32.totalorder %s25, 1
      %p183 = scmp.ne.s32.totalorder %s178, %s180
      %p184 = scmp.eq.s32.totalorder %s25, 0
      %p185 = por %p183, %p184
      %p186 = scmp.ne.s32.totalorder %s178, %s180
      %p187 = scmp.eq.s32.totalorder %s30, 1
      %p188 = por %p186, %p187
      %p189 = scmp.ne.s32.totalorder %s180, %s181
      %p190 = scmp.eq.s32.totalorder %s30, 0
      %p191 = por %p189, %p190
      %p192 = scmp.ne.s32.totalorder %s180, %s181
      %p193 = scmp.eq.s32.totalorder %s31, 1
      %p194 = por %p192, %p193
      %p196 = scmp.ne.s32.totalorder %s181, %s195
      %p197 = scmp.eq.s32.totalorder %s31, 0
      %p198 = por %p196, %p197
      %s200 = sadd.s32 %s199, 1
      %p203 = scmp.eq.s32.totalorder %s25, 1
      %p204 = scmp.ne.s32.totalorder %s199, %s201
      %p205 = scmp.eq.s32.totalorder %s25, 0
      %p206 = por %p204, %p205
      %p207 = scmp.ne.s32.totalorder %s199, %s201
      %p208 = scmp.eq.s32.totalorder %s30, 1
      %p209 = por %p207, %p208
      %p210 = scmp.ne.s32.totalorder %s201, %s202
      %p211 = scmp.eq.s32.totalorder %s30, 0
      %p212 = por %p210, %p211
      %p213 = scmp.ne.s32.totalorder %s201, %s202
      %p214 = scmp.eq.s32.totalorder %s31, 1
      %p215 = por %p213, %p214
      %p217 = scmp.ne.s32.totalorder %s202, %s216
      %p218 = scmp.eq.s32.totalorder %s31, 0
      %p219 = por %p217, %p218
      %s221 = sadd.s32 %s220, 1
      %p224 = scmp.eq.s32.totalorder %s25, 1
      %p225 = scmp.ne.s32.totalorder %s220, %s222
      %p226 = scmp.eq.s32.totalorder %s25, 0
      %p227 = por %p225, %p226
      %p228 = scmp.ne.s32.totalorder %s220, %s222
      %p229 = scmp.eq.s32.totalorder %s30, 1
      %p230 = por %p228, %p229
      %p231 = scmp.ne.s32.totalorder %s222, %s223
      %p232 = scmp.eq.s32.totalorder %s30, 0
      %p233 = por %p231, %p232
      %p234 = scmp.ne.s32.totalorder %s222, %s223
      %p235 = scmp.eq.s32.totalorder %s31, 1
      %p236 = por %p234, %p235
      %p238 = scmp.ne.s32.totalorder %s223, %s237
      %p239 = scmp.eq.s32.totalorder %s31, 0
      %p240 = por %p238, %p239
      %s242 = sadd.s32 %s241, 1
      %p245 = scmp.eq.s32.totalorder %s25, 1
      %p246 = scmp.ne.s32.totalorder %s241, %s243
      %p247 = scmp.eq.s32.totalorder %s25, 0
      %p248 = por %p246, %p247
      %p249 = scmp.ne.s32.totalorder %s241, %s243
      %p250 = scmp.eq.s32.totalorder %s30, 1
      %p251 = por %p249, %p250
      %p252 = scmp.ne.s32.totalorder %s243, %s244
      %p253 = scmp.eq.s32.totalorder %s30, 0
      %p254 = por %p252, %p253
      %p255 = scmp.ne.s32.totalorder %s243, %s244
      %p256 = scmp.eq.s32.totalorder %s31, 1
      %p257 = por %p255, %p256
      %p259 = scmp.ne.s32.totalorder %s244, %s258
      %p260 = scmp.eq.s32.totalorder %s31, 0
      %p261 = por %p259, %p260
      %s263 = sadd.s32 %s262, 1
      %p266 = scmp.eq.s32.totalorder %s25, 1
      %p267 = scmp.ne.s32.totalorder %s262, %s264
      %p268 = scmp.eq.s32.totalorder %s25, 0
      %p269 = por %p267, %p268
      %p270 = scmp.ne.s32.totalorder %s262, %s264
      %p271 = scmp.eq.s32.totalorder %s30, 1
      %p272 = por %p270, %p271
      %p273 = scmp.ne.s32.totalorder %s264, %s265
      %p274 = scmp.eq.s32.totalorder %s30, 0
      %p275 = por %p273, %p274
      %p276 = scmp.ne.s32.totalorder %s264, %s265
      %p277 = scmp.eq.s32.totalorder %s31, 1
      %p278 = por %p276, %p277
      %p280 = scmp.ne.s32.totalorder %s265, %s279
      %p281 = scmp.eq.s32.totalorder %s31, 0
      %p282 = por %p280, %p281
      %s284 = sadd.s32 %s283, 1
      %p287 = scmp.eq.s32.totalorder %s25, 1
      %p288 = scmp.ne.s32.totalorder %s283, %s285
      %p289 = scmp.eq.s32.totalorder %s25, 0
      %p290 = por %p288, %p289
      %p291 = scmp.ne.s32.totalorder %s283, %s285
      %p292 = scmp.eq.s32.totalorder %s30, 1
      %p293 = por %p291, %p292
      %p294 = scmp.ne.s32.totalorder %s285, %s286
      %p295 = scmp.eq.s32.totalorder %s30, 0
      %p296 = por %p294, %p295
      %p297 = scmp.ne.s32.totalorder %s285, %s286
      %p298 = scmp.eq.s32.totalorder %s31, 1
      %p299 = por %p297, %p298
      %p301 = scmp.ne.s32.totalorder %s286, %s300
      %p302 = scmp.eq.s32.totalorder %s31, 0
      %p303 = por %p301, %p302
      %s305 = sadd.s32 %s304, 1
      %p308 = scmp.eq.s32.totalorder %s25, 1
      %p309 = scmp.ne.s32.totalorder %s304, %s306
      %p310 = scmp.eq.s32.totalorder %s25, 0
      %p311 = por %p309, %p310
      %p312 = scmp.ne.s32.totalorder %s304, %s306
      %p313 = scmp.eq.s32.totalorder %s30, 1
      %p314 = por %p312, %p313
      %p315 = scmp.ne.s32.totalorder %s306, %s307
      %p316 = scmp.eq.s32.totalorder %s30, 0
      %p317 = por %p315, %p316
      %p318 = scmp.ne.s32.totalorder %s306, %s307
      %p319 = scmp.eq.s32.totalorder %s31, 1
      %p320 = por %p318, %p319
      %p322 = scmp.ne.s32.totalorder %s307, %s321
      %p323 = scmp.eq.s32.totalorder %s31, 0
      %p324 = por %p322, %p323
      %s326 = sadd.s32 %s325, 1
      %p329 = scmp.eq.s32.totalorder %s25, 1
      %p330 = scmp.ne.s32.totalorder %s325, %s327
      %p331 = scmp.eq.s32.totalorder %s25, 0
      %p332 = por %p330, %p331
      %p333 = scmp.ne.s32.totalorder %s325, %s327
      %p334 = scmp.eq.s32.totalorder %s30, 1
      %p335 = por %p333, %p334
      %p336 = scmp.ne.s32.totalorder %s327, %s328
      %p337 = scmp.eq.s32.totalorder %s30, 0
      %p338 = por %p336, %p337
      %p339 = scmp.ne.s32.totalorder %s327, %s328
      %p340 = scmp.eq.s32.totalorder %s31, 1
      %p341 = por %p339, %p340
      %p343 = scmp.ne.s32.totalorder %s328, %s342
      %p344 = scmp.eq.s32.totalorder %s31, 0
      %p345 = por %p343, %p344
      %s347 = sadd.s32 %s346, 1
      %p350 = scmp.eq.s32.totalorder %s25, 1
      %p351 = scmp.ne.s32.totalorder %s346, %s348
      %p352 = scmp.eq.s32.totalorder %s25, 0
      %p353 = por %p351, %p352
      %p354 = scmp.ne.s32.totalorder %s346, %s348
      %p355 = scmp.eq.s32.totalorder %s30, 1
      %p356 = por %p354, %p355
      %p357 = scmp.ne.s32.totalorder %s348, %s349
      %p358 = scmp.eq.s32.totalorder %s30, 0
      %p359 = por %p357, %p358
      %p360 = scmp.ne.s32.totalorder %s348, %s349
      %p361 = scmp.eq.s32.totalorder %s31, 1
      %p362 = por %p360, %p361
      %p364 = scmp.ne.s32.totalorder %s349, %s363
      %p365 = scmp.eq.s32.totalorder %s31, 0
      %p366 = por %p364, %p365
      %s367 = ssub.s32 %s32, %s51
      %s368 = ssub.s32 %s33, %s47
      %s369 = sor.u32 %s367, %s368
      %p370 = scmp.eq.s32.totalorder %s369, 0
      %s372 = sadd.s32 %s371, 1
      %s373 = scalar_select %p370, %s371, %s372
      %p376 = pneg %p370
      %p377 = scmp.eq.s32.totalorder %s25, 1
      %p378 = por %p376, %p377
      %p379 = scmp.ne.s32.totalorder %s371, %s374
      %p380 = scmp.eq.s32.totalorder %s25, 0
      %p381 = por %p379, %p380
      %p382 = scmp.ne.s32.totalorder %s371, %s374
      %p383 = scmp.eq.s32.totalorder %s30, 1
      %p384 = por %p382, %p383
      %p385 = scmp.ne.s32.totalorder %s374, %s375
      %p386 = scmp.eq.s32.totalorder %s30, 0
      %p387 = por %p385, %p386
      %p388 = scmp.ne.s32.totalorder %s374, %s375
      %p389 = scmp.eq.s32.totalorder %s31, 1
      %p390 = por %p388, %p389
      %p392 = scmp.ne.s32.totalorder %s375, %s391
      %p393 = scmp.eq.s32.totalorder %s31, 0
      %p394 = por %p392, %p393
      %p395 = scmp.le.s32.totalorder 1, %s25
      %p396 = scmp.lt.s32.totalorder %s25, 3
      %p397 = pnand %p395, %p396
      %p398 = pneg %p397
      // Predicated region
      $region9: #{tpu_custom_call.1} parent=5 // pred_check
        _
      $region10: #{tpu_custom_call.1} parent=5 // pred_check_branch
        %400 = sbr.rel (%p397) target = $region12
      $region11: #{tpu_custom_call.1} parent=5 // pred_region
        %s401 = ssub.s32 %s25, 1
        // Predicated region
        $region13: #{tpu_custom_call.1} parent=11 // pred_check
          %p402 = pneg %p149
        $region14: #{tpu_custom_call.1} parent=11 // pred_check_branch
          %404 = sbr.rel (%p402) target = $region16
        $region15: #{tpu_custom_call.1} parent=11 // pred_region
          _
        $region16: #{tpu_custom_call.1} parent=11 // pred_fallthru
          _
        // Predicated region
        $region17: #{tpu_custom_call.1} parent=11 // pred_check
          %p405 = pneg %p170
        $region18: #{tpu_custom_call.1} parent=11 // pred_check_branch
          %407 = sbr.rel (%p405) target = $region20
        $region19: #{tpu_custom_call.1} parent=11 // pred_region
          %s409 = ssub.s32 256, 256
          %410 = vsyncadd [#allocation7], %s409
          %s411 = sshll.u32 [#allocation6], 4
          %s412 = int_to_ptr.vmem [resolvable:$true] %s411
          %417 = dma.hbm_to_vmem [thread:$0]  %s4, 256, %s412, [#allocation7], 64, 64, 4
        $region20: #{tpu_custom_call.1} parent=11 // pred_fallthru
          _
        // Predicated region
        $region21: #{tpu_custom_call.1} parent=11 // pred_check
          %p418 = pneg %p191
        $region22: #{tpu_custom_call.1} parent=11 // pred_check_branch
          %420 = sbr.rel (%p418) target = $region24
        $region23: #{tpu_custom_call.1} parent=11 // pred_region
          %s422 = ssub.s32 256, 256
          %423 = vsyncadd [#allocation10], %s422
          %s424 = sshll.u32 [#allocation9], 4
          %s425 = int_to_ptr.vmem [resolvable:$true] %s424
          %430 = dma.hbm_to_vmem [thread:$0]  %s5, 256, %s425, [#allocation10], 64, 64, 4
        $region24: #{tpu_custom_call.1} parent=11 // pred_fallthru
          _
        // Predicated region
        $region25: #{tpu_custom_call.1} parent=11 // pred_check
          %p431 = pneg %p212
        $region26: #{tpu_custom_call.1} parent=11 // pred_check_branch
          %433 = sbr.rel (%p431) target = $region28
        $region27: #{tpu_custom_call.1} parent=11 // pred_region
          _
        $region28: #{tpu_custom_call.1} parent=11 // pred_fallthru
          _
        // Predicated region
        $region29: #{tpu_custom_call.1} parent=11 // pred_check
          %p434 = pneg %p233
        $region30: #{tpu_custom_call.1} parent=11 // pred_check_branch
          %436 = sbr.rel (%p434) target = $region32
        $region31: #{tpu_custom_call.1} parent=11 // pred_region
          _
        $region32: #{tpu_custom_call.1} parent=11 // pred_fallthru
          _
        // Predicated region
        $region33: #{tpu_custom_call.1} parent=11 // pred_check
          %p437 = pneg %p254
        $region34: #{tpu_custom_call.1} parent=11 // pred_check_branch
          %439 = sbr.rel (%p437) target = $region36
        $region35: #{tpu_custom_call.1} parent=11 // pred_region
          %s441 = ssub.s32 256, 256
          %442 = vsyncadd [#allocation10], %s441
          %s443 = sshll.u32 [#allocation11], 4
          %s444 = int_to_ptr.vmem [resolvable:$true] %s443
          %449 = dma.hbm_to_vmem [thread:$0]  %s8, 256, %s444, [#allocation10], 64, 64, 4
        $region36: #{tpu_custom_call.1} parent=11 // pred_fallthru
          _
        // Predicated region
        $region37: #{tpu_custom_call.1} parent=11 // pred_check
          %p450 = pneg %p275
        $region38: #{tpu_custom_call.1} parent=11 // pred_check_branch
          %452 = sbr.rel (%p450) target = $region40
        $region39: #{tpu_custom_call.1} parent=11 // pred_region
          _
        $region40: #{tpu_custom_call.1} parent=11 // pred_fallthru
          _
        // Predicated region
        $region41: #{tpu_custom_call.1} parent=11 // pred_check
          %p453 = pneg %p296
        $region42: #{tpu_custom_call.1} parent=11 // pred_check_branch
          %455 = sbr.rel (%p453) target = $region44
        $region43: #{tpu_custom_call.1} parent=11 // pred_region
          _
        $region44: #{tpu_custom_call.1} parent=11 // pred_fallthru
          _
        // Predicated region
        $region45: #{tpu_custom_call.1} parent=11 // pred_check
          %p456 = pneg %p317
        $region46: #{tpu_custom_call.1} parent=11 // pred_check_branch
          %458 = sbr.rel (%p456) target = $region48
        $region47: #{tpu_custom_call.1} parent=11 // pred_region
          _
        $region48: #{tpu_custom_call.1} parent=11 // pred_fallthru
          _
        // Predicated region
        $region49: #{tpu_custom_call.1} parent=11 // pred_check
          %p459 = pneg %p338
        $region50: #{tpu_custom_call.1} parent=11 // pred_check_branch
          %461 = sbr.rel (%p459) target = $region52
        $region51: #{tpu_custom_call.1} parent=11 // pred_region
          _
        $region52: #{tpu_custom_call.1} parent=11 // pred_fallthru
          _
        // Predicated region
        $region53: #{tpu_custom_call.1} parent=11 // pred_check
          %p462 = pneg %p359
        $region54: #{tpu_custom_call.1} parent=11 // pred_check_branch
          %464 = sbr.rel (%p462) target = $region56
        $region55: #{tpu_custom_call.1} parent=11 // pred_region
          _
        $region56: #{tpu_custom_call.1} parent=11 // pred_fallthru
          _
      $region12: #{tpu_custom_call.1} parent=5 // pred_fallthru
        _
      %p465 = scmp.lt.s32.totalorder %s25, 2
      // Predicated region
      $region57: #{tpu_custom_call.1} parent=5 // pred_check
        %p466 = pneg %p465
      $region58: #{tpu_custom_call.1} parent=5 // pred_check_branch
        %468 = sbr.rel (%p466) target = $region60
      $region59: #{tpu_custom_call.1} parent=5 // pred_region
        // Predicated region
        $region61: #{tpu_custom_call.1} parent=59 // pred_check
          %p469 = pneg %p66
        $region62: #{tpu_custom_call.1} parent=59 // pred_check_branch
          %471 = sbr.rel (%p469) target = $region64
        $region63: #{tpu_custom_call.1} parent=59 // pred_region
          %p472 = scmp.lt.s32.totalorder %s32, 1
          %s473 = scalar_select %p472, %s32, 1
          %p474 = scmp.lt.s32.totalorder %s33, 0
          %s475 = scalar_select %p474, %s33, 0
          %s476 = sadd.s32 %s475, %s473
          %s477 = smul.addr %s476, 8
          %s478 = scalar_lea.vmem %s0, %s477
        $region64: #{tpu_custom_call.1} parent=59 // pred_fallthru
          _
        // Predicated region
        $region65: #{tpu_custom_call.1} parent=59 // pred_check
          %p479 = pneg %p94
        $region66: #{tpu_custom_call.1} parent=59 // pred_check_branch
          %481 = sbr.rel (%p479) target = $region68
        $region67: #{tpu_custom_call.1} parent=59 // pred_region
          %p482 = scmp.lt.s32.totalorder %s32, 1
          %s483 = scalar_select %p482, %s32, 1
          %p484 = scmp.lt.s32.totalorder %s34, 0
          %s485 = scalar_select %p484, %s34, 0
          %s486 = sadd.s32 %s485, %s483
          %s487 = smul.addr %s486, 8
          %s488 = scalar_lea.vmem %s1, %s487
        $region68: #{tpu_custom_call.1} parent=59 // pred_fallthru
          _
        // Predicated region
        $region69: #{tpu_custom_call.1} parent=59 // pred_check
          %p489 = pneg %p122
        $region70: #{tpu_custom_call.1} parent=59 // pred_check_branch
          %491 = sbr.rel (%p489) target = $region72
        $region71: #{tpu_custom_call.1} parent=59 // pred_region
          %p492 = scmp.lt.s32.totalorder %s32, 1
          %s493 = scalar_select %p492, %s32, 1
          %p494 = scmp.lt.s32.totalorder %s34, 0
          %s495 = scalar_select %p494, %s34, 0
          %s496 = sadd.s32 %s495, %s493
          %s497 = scalar_lea.vmem %s2, %s496
        $region72: #{tpu_custom_call.1} parent=59 // pred_fallthru
          _
      $region60: #{tpu_custom_call.1} parent=5 // pred_fallthru
        _
      %p498 = scmp.le.s32.totalorder 1, %s25
      %p499 = scmp.lt.s32.totalorder %s25, 3
      %p500 = pnand %p498, %p499
      %p501 = pneg %p500
      // Predicated region
      $region73: #{tpu_custom_call.1} parent=5 // pred_check
        _
      $region74: #{tpu_custom_call.1} parent=5 // pred_check_branch
        %503 = sbr.rel (%p500) target = $region76
      $region75: #{tpu_custom_call.1} parent=5 // pred_region
        %s504 = ssub.s32 %s25, 1
        // Predicated region
        $region77: #{tpu_custom_call.1} parent=75 // pred_check
          %p505 = pneg %p170
        $region78: #{tpu_custom_call.1} parent=75 // pred_check_branch
          %507 = sbr.rel (%p505) target = $region80
        $region79: #{tpu_custom_call.1} parent=75 // pred_region
          %508 = dma.done [#allocation7], 256
        $region80: #{tpu_custom_call.1} parent=75 // pred_fallthru
          _
        // Predicated region
        $region81: #{tpu_custom_call.1} parent=75 // pred_check
          %p509 = pneg %p191
        $region82: #{tpu_custom_call.1} parent=75 // pred_check_branch
          %511 = sbr.rel (%p509) target = $region84
        $region83: #{tpu_custom_call.1} parent=75 // pred_region
          %512 = dma.done [#allocation10], 256
        $region84: #{tpu_custom_call.1} parent=75 // pred_fallthru
          _
        // Predicated region
        $region85: #{tpu_custom_call.1} parent=75 // pred_check
          %p513 = pneg %p254
        $region86: #{tpu_custom_call.1} parent=75 // pred_check_branch
          %515 = sbr.rel (%p513) target = $region88
        $region87: #{tpu_custom_call.1} parent=75 // pred_region
          %516 = dma.done [#allocation10], 256
        $region88: #{tpu_custom_call.1} parent=75 // pred_fallthru
          _
        %p517 = scmp.lt.s32.totalorder %s35, 1
        %s518 = scalar_select %p517, %s35, 1
        %p519 = scmp.lt.s32.totalorder %s36, 0
        %s520 = scalar_select %p519, %s36, 0
        %s521 = sadd.s32 %s520, %s518
        %s522 = smul.addr %s521, 8
        %s523 = scalar_lea.vmem %s0, %s522
        %p524 = pneg %p72
        %p525 = pneg %p69
        %p526 = scmp.lt.s32.totalorder %s35, 1
        %s527 = scalar_select %p526, %s35, 1
        %p528 = scmp.lt.s32.totalorder %s37, 0
        %s529 = scalar_select %p528, %s37, 0
        %s530 = sadd.s32 %s529, %s527
        %s531 = smul.addr %s530, 8
        %s532 = scalar_lea.vmem %s1, %s531
        %p533 = pneg %p100
        %p534 = pneg %p97
        %p535 = scmp.lt.s32.totalorder %s35, 1
        %s536 = scalar_select %p535, %s35, 1
        %p537 = scmp.lt.s32.totalorder %s37, 0
        %s538 = scalar_select %p537, %s37, 0
        %s539 = sadd.s32 %s538, %s536
        %s540 = scalar_lea.vmem %s2, %s539
        %p541 = pneg %p128
        %p542 = pneg %p125
        %p543 = pneg %p149
        %p544 = pneg %p146
        %p545 = pneg %p170
        %p546 = pneg %p167
        %p547 = pneg %p191
        %p548 = pneg %p188
        %p549 = pneg %p212
        %p550 = pneg %p209
        %p551 = pneg %p233
        %p552 = pneg %p230
        %p553 = pneg %p254
        %p554 = pneg %p251
        %p555 = pneg %p275
        %p556 = pneg %p272
        %p557 = pneg %p296
        %p558 = pneg %p293
        %p559 = pneg %p317
        %p560 = pneg %p314
        %p561 = pneg %p338
        %p562 = pneg %p335
        %p563 = pneg %p359
        %p564 = pneg %p356
        %p565 = pneg %p387
        %p566 = pneg %p384
        %s567 = sand.u32 %s374, 1
        %s568 = scalar_lea.sflag [#allocation8], %s567
        %s569 = sand.u32 %s374, 1
        %s570 = smul.addr %s569, 8
        %s571 = scalar_lea.vmem [#allocation12], %s570
        %p572 = scmp.lt.s32.totalorder %s35, 1
        %s573 = scalar_select %p572, %s35, 1
        %p574 = scmp.lt.s32.totalorder %s36, 0
        %s575 = scalar_select %p574, %s36, 0
        %s576 = sadd.s32 %s575, %s573
        %s577 = smul.addr %s576, 8
        %s578 = scalar_lea.vmem %s0, %s577
        %p579 = scmp.lt.s32.totalorder %s35, 1
        %s580 = scalar_select %p579, %s35, 1
        %p581 = scmp.lt.s32.totalorder %s37, 0
        %s582 = scalar_select %p581, %s37, 0
        %s583 = sadd.s32 %s582, %s580
        %s584 = smul.addr %s583, 8
        %s585 = scalar_lea.vmem %s1, %s584
        %p586 = scmp.lt.s32.totalorder %s35, 1
        %s587 = scalar_select %p586, %s35, 1
        %p588 = scmp.lt.s32.totalorder %s37, 0
        %s589 = scalar_select %p588, %s37, 0
        %s590 = sadd.s32 %s589, %s587
        %s591 = scalar_lea.vmem %s2, %s590
        %p593 = scmp.eq.s32.totalorder %s37, 0
        // Predicated region
        $region89: #{tpu_custom_call.1} parent=75 // pred_check
          %p594 = pneg %p593
        $region90: #{tpu_custom_call.1} parent=75 // pred_check_branch
          %596 = sbr.rel (%p594) target = $region92
        $region91: #{tpu_custom_call.1} parent=75 // pred_region
          %v597 = vld [vmem:[%s578] sm:$0xff]
          %v598 = vpack.c.bf16 %v597, %v597
          %v599 = vld [vmem:[%s3] sm:$0xf]
          %v600 = vld [vmem:[%s3 + $0x4] sm:$0xf]
          %v601 = vld [vmem:[%s3 + $0x8] sm:$0xf]
          %v602 = vld [vmem:[%s3 + $0xc] sm:$0xf]
          %v607 = vunpack.c.l.b16 %v599
          %v608 = vunpack.c.l.b16 %v600
          %v609 = vunpack.c.l.b16 %v601
          %v610 = vunpack.c.l.b16 %v602
          %v611 = vpack.c.b16 %v608, %v607
          %v612 = vpack.c.b16 %v610, %v609
          %vm615 = vcmask 261120
          %v617 = vsel %vm615, %v598, 0
          %619 = vmatprep.subr.bf16.mxu0 0
          %620 = vmatpush1.bf16.msra.mxu0 %v611
          %621 = vmatprep.subr.bf16.mxu0 0
          %622 = vmatpush1.bf16.msra.mxu0 %v612
          %623 = vmatprep.subr.bf16.mxu0 0
          %624 = vmatpush1.bf16.msra.mxu0 0
          %625 = vmatprep.subr.bf16.mxu0 0
          %626 = vmatpush1.bf16.msra.mxu0 0
          %627 = vmatprep.subr.bf16.mxu0 0
          %628 = vmatpush1.bf16.msra.mxu0 0
          %629 = vmatprep.subr.bf16.mxu0 0
          %630 = vmatpush1.bf16.msra.mxu0 0
          %631 = vmatprep.subr.bf16.mxu0 0
          %632 = vmatpush1.bf16.msra.mxu0 0
          %633 = vmatprep.subr.bf16.mxu0 0
          %634 = vmatpush1.bf16.msra.mxu0 0
          %635 = vmatprep.subr.bf16.mxu0 0
          %636 = vmatpush1.bf16.msra.mxu0 0
          %637 = vmatprep.subr.bf16.mxu0 0
          %638 = vmatpush1.bf16.msra.mxu0 0
          %639 = vmatprep.subr.bf16.mxu0 0
          %640 = vmatpush1.bf16.msra.mxu0 0
          %641 = vmatprep.subr.bf16.mxu0 0
          %642 = vmatpush1.bf16.msra.mxu0 0
          %643 = vmatprep.subr.bf16.mxu0 0
          %644 = vmatpush1.bf16.msra.mxu0 0
          %645 = vmatprep.subr.bf16.mxu0 0
          %646 = vmatpush1.bf16.msra.mxu0 0
          %647 = vmatprep.subr.bf16.mxu0 0
          %648 = vmatpush1.bf16.msra.mxu0 0
          %649 = vmatprep.subr.bf16.mxu0 0
          %650 = vmatpush1.bf16.msra.mxu0 0
          %651 = vmatprep.mubr.bf16.mxu0 0
          %652 = vmatmul.mubr.bf16.gmra.mrb[0].mxu0 %v617
          %v653 = vpop.f32.mrb[0].mxu0
          %v654 = vadd.f32 0.0, %v653
          %v655 = vpop.f32.mrb[0].mxu0
          %v656 = vpop.f32.mrb[0].mxu0
          %v657 = vpop.f32.mrb[0].mxu0
          %658 = vdwg.mxu0
          %v659 = vmul.f32 %v654, 0.35355338
          %661 = vrot.lane.b32.xlu0 %v659, 120
          %v662 = vpop.permute.xlu0 %661
          %664 = vrot.lane.b32.xlu0 %v659, 112
          %v665 = vpop.permute.xlu0 %664
          %667 = vrot.lane.b32.xlu0 %v659, 104
          %v668 = vpop.permute.xlu0 %667
          %v670 = vpack.c.bf16 %v659, %v659
          %v671 = vpack.c.bf16 %v662, %v662
          %v672 = vpack.c.bf16 %v665, %v665
          %v673 = vpack.c.bf16 %v668, %v668
          %vm674 = vcmask 60416
          %675 = vst.msk [vmem:[#allocation2] sm:$0xf] %vm674, %v670
          %676 = vst.msk [vmem:[#allocation2 + $0x4] sm:$0xf] %vm674, %v671
          %677 = vst.msk [vmem:[#allocation2 + $0x8] sm:$0xf] %vm674, %v672
          %678 = vst.msk [vmem:[#allocation2 + $0xc] sm:$0xf] %vm674, %v673
          %vm679 = vcmask 7168
          %680 = vst.msk [vmem:[#allocation3] sm:$0xff] %vm679, -inf
          %681 = vst.msk [vmem:[#allocation3 + $0x8] sm:$0xff] %vm679, -inf
          %682 = vst.msk [vmem:[#allocation3 + $0x10] sm:$0xff] %vm679, -inf
          %683 = vst.msk [vmem:[#allocation3 + $0x18] sm:$0xff] %vm679, -inf
          %684 = vst.msk [vmem:[#allocation4] sm:$0xff] %vm679, 0.0
          %685 = vst.msk [vmem:[#allocation4 + $0x8] sm:$0xff] %vm679, 0.0
          %686 = vst.msk [vmem:[#allocation4 + $0x10] sm:$0xff] %vm679, 0.0
          %687 = vst.msk [vmem:[#allocation4 + $0x18] sm:$0xff] %vm679, 0.0
          %vm688 = vcmask 64512
          %689 = vst.msk [vmem:[#allocation5] sm:$0xff] %vm688, 0.0
          %690 = vst.msk [vmem:[#allocation5 + $0x8] sm:$0xff] %vm688, 0.0
          %691 = vst.msk [vmem:[#allocation5 + $0x10] sm:$0xff] %vm688, 0.0
          %692 = vst.msk [vmem:[#allocation5 + $0x18] sm:$0xff] %vm688, 0.0
        $region92: #{tpu_custom_call.1} parent=75 // pred_fallthru
          _
        %v693 = vld [vmem:[%s585] sm:$0xff]
        %v694 = vpack.c.bf16 %v693, %v693
        %v695 = vld [vmem:[#allocation6] sm:$0xf]
        %v696 = vld [vmem:[#allocation6 + $0x4] sm:$0xf]
        %v697 = vld [vmem:[#allocation6 + $0x8] sm:$0xf]
        %v698 = vld [vmem:[#allocation6 + $0xc] sm:$0xf]
        %v703 = vunpack.c.l.b16 %v695
        %v704 = vunpack.c.l.b16 %v696
        %v705 = vunpack.c.l.b16 %v697
        %v706 = vunpack.c.l.b16 %v698
        %v707 = vpack.c.b16 %v704, %v703
        %v708 = vpack.c.b16 %v706, %v705
        %vm711 = vcmask 261120
        %v713 = vsel %vm711, %v694, 0
        %715 = vmatprep.subr.bf16.mxu0 0
        %716 = vmatpush1.bf16.msra.mxu0 %v707
        %717 = vmatprep.subr.bf16.mxu0 0
        %718 = vmatpush1.bf16.msra.mxu0 %v708
        %719 = vmatprep.subr.bf16.mxu0 0
        %720 = vmatpush1.bf16.msra.mxu0 0
        %721 = vmatprep.subr.bf16.mxu0 0
        %722 = vmatpush1.bf16.msra.mxu0 0
        %723 = vmatprep.subr.bf16.mxu0 0
        %724 = vmatpush1.bf16.msra.mxu0 0
        %725 = vmatprep.subr.bf16.mxu0 0
        %726 = vmatpush1.bf16.msra.mxu0 0
        %727 = vmatprep.subr.bf16.mxu0 0
        %728 = vmatpush1.bf16.msra.mxu0 0
        %729 = vmatprep.subr.bf16.mxu0 0
        %730 = vmatpush1.bf16.msra.mxu0 0
        %731 = vmatprep.subr.bf16.mxu0 0
        %732 = vmatpush1.bf16.msra.mxu0 0
        %733 = vmatprep.subr.bf16.mxu0 0
        %734 = vmatpush1.bf16.msra.mxu0 0
        %735 = vmatprep.subr.bf16.mxu0 0
        %736 = vmatpush1.bf16.msra.mxu0 0
        %737 = vmatprep.subr.bf16.mxu0 0
        %738 = vmatpush1.bf16.msra.mxu0 0
        %739 = vmatprep.subr.bf16.mxu0 0
        %740 = vmatpush1.bf16.msra.mxu0 0
        %741 = vmatprep.subr.bf16.mxu0 0
        %742 = vmatpush1.bf16.msra.mxu0 0
        %743 = vmatprep.subr.bf16.mxu0 0
        %744 = vmatpush1.bf16.msra.mxu0 0
        %745 = vmatprep.subr.bf16.mxu0 0
        %746 = vmatpush1.bf16.msra.mxu0 0
        %747 = vmatprep.mubr.bf16.mxu0 0
        %748 = vmatmul.mubr.bf16.gmra.mrb[0].mxu0 %v713
        %v749 = vpop.f32.mrb[0].mxu0
        %v750 = vadd.f32 0.0, %v749
        %v751 = vpop.f32.mrb[0].mxu0
        %v752 = vpop.f32.mrb[0].mxu0
        %v753 = vpop.f32.mrb[0].mxu0
        %754 = vdwg.mxu0
        %756 = vrot.lane.b32.xlu0 %v750, 120
        %v757 = vpop.permute.xlu0 %756
        %759 = vrot.lane.b32.xlu0 %v750, 112
        %v760 = vpop.permute.xlu0 %759
        %762 = vrot.lane.b32.xlu0 %v750, 104
        %v763 = vpop.permute.xlu0 %762
        %v765 = vpack.c.bf16 %v750, %v750
        %v766 = vpack.c.bf16 %v757, %v757
        %v767 = vpack.c.bf16 %v760, %v760
        %v768 = vpack.c.bf16 %v763, %v763
        %v769 = vld [vmem:[#allocation2] sm:$0xf]
        %v770 = vld [vmem:[#allocation2 + $0x4] sm:$0xf]
        %v771 = vld [vmem:[#allocation2 + $0x8] sm:$0xf]
        %v772 = vld [vmem:[#allocation2 + $0xc] sm:$0xf]
        %v773 = vld [vmem:[%s591] sm:$0x1]
        %v775 = vlaneseq
        %v776 = vshrl.u32 %v775, 7
        %v777 = vsub.s32 0, %v776
        %v778 = vrot.slane %v773, %v777
        %vm780 = vcmask 64512
        %v782 = vsel %vm780, %v769, 0
        %v785 = vsel %vm780, %v765, 0
        %787 = vmatprep.subr.bf16.mxu0 0
        %788 = vmatpush1.bf16.xpose.msra.mxu0 %v785
        %789 = vmatprep.subr.bf16.mxu0 0
        %790 = vmatpush1.bf16.xpose.msra.mxu0 0
        %791 = vmatprep.subr.bf16.mxu0 0
        %792 = vmatpush1.bf16.xpose.msra.mxu0 0
        %793 = vmatprep.subr.bf16.mxu0 0
        %794 = vmatpush1.bf16.xpose.msra.mxu0 0
        %795 = vmatprep.subr.bf16.mxu0 0
        %796 = vmatpush1.bf16.xpose.msra.mxu0 0
        %797 = vmatprep.subr.bf16.mxu0 0
        %798 = vmatpush1.bf16.xpose.msra.mxu0 0
        %799 = vmatprep.subr.bf16.mxu0 0
        %800 = vmatpush1.bf16.xpose.msra.mxu0 0
        %801 = vmatprep.subr.bf16.mxu0 0
        %802 = vmatpush1.bf16.xpose.msra.mxu0 0
        %803 = vmatprep.subr.bf16.mxu0 0
        %804 = vmatpush1.bf16.xpose.msra.mxu0 0
        %805 = vmatprep.subr.bf16.mxu0 0
        %806 = vmatpush1.bf16.xpose.msra.mxu0 0
        %807 = vmatprep.subr.bf16.mxu0 0
        %808 = vmatpush1.bf16.xpose.msra.mxu0 0
        %809 = vmatprep.subr.bf16.mxu0 0
        %810 = vmatpush1.bf16.xpose.msra.mxu0 0
        %811 = vmatprep.subr.bf16.mxu0 0
        %812 = vmatpush1.bf16.xpose.msra.mxu0 0
        %813 = vmatprep.subr.bf16.mxu0 0
        %814 = vmatpush1.bf16.xpose.msra.mxu0 0
        %815 = vmatprep.subr.bf16.mxu0 0
        %816 = vmatpush1.bf16.xpose.msra.mxu0 0
        %817 = vmatprep.subr.bf16.mxu0 0
        %818 = vmatpush1.bf16.xpose.msra.mxu0 0
        %819 = vmatprep.mubr.bf16.mxu0 0
        %820 = vmatmul.mubr.bf16.gmra.mrb[0].mxu0 %v782
        %v821 = vpop.f32.mrb[0].mxu0
        %v822 = vadd.f32 %v778, %v821
        %v823 = vpop.f32.mrb[0].mxu0
        %v824 = vpop.f32.mrb[0].mxu0
        %v825 = vpop.f32.mrb[0].mxu0
        %826 = vdwg.mxu0
        %v828 = vsel %vm780, %v770, 0
        %v831 = vsel %vm780, %v766, 0
        %833 = vmatprep.subr.bf16.mxu0 0
        %834 = vmatpush1.bf16.xpose.msra.mxu0 %v831
        %835 = vmatprep.subr.bf16.mxu0 0
        %836 = vmatpush1.bf16.xpose.msra.mxu0 0
        %837 = vmatprep.subr.bf16.mxu0 0
        %838 = vmatpush1.bf16.xpose.msra.mxu0 0
        %839 = vmatprep.subr.bf16.mxu0 0
        %840 = vmatpush1.bf16.xpose.msra.mxu0 0
        %841 = vmatprep.subr.bf16.mxu0 0
        %842 = vmatpush1.bf16.xpose.msra.mxu0 0
        %843 = vmatprep.subr.bf16.mxu0 0
        %844 = vmatpush1.bf16.xpose.msra.mxu0 0
        %845 = vmatprep.subr.bf16.mxu0 0
        %846 = vmatpush1.bf16.xpose.msra.mxu0 0
        %847 = vmatprep.subr.bf16.mxu0 0
        %848 = vmatpush1.bf16.xpose.msra.mxu0 0
        %849 = vmatprep.subr.bf16.mxu0 0
        %850 = vmatpush1.bf16.xpose.msra.mxu0 0
        %851 = vmatprep.subr.bf16.mxu0 0
        %852 = vmatpush1.bf16.xpose.msra.mxu0 0
        %853 = vmatprep.subr.bf16.mxu0 0
        %854 = vmatpush1.bf16.xpose.msra.mxu0 0
        %855 = vmatprep.subr.bf16.mxu0 0
        %856 = vmatpush1.bf16.xpose.msra.mxu0 0
        %857 = vmatprep.subr.bf16.mxu0 0
        %858 = vmatpush1.bf16.xpose.msra.mxu0 0
        %859 = vmatprep.subr.bf16.mxu0 0
        %860 = vmatpush1.bf16.xpose.msra.mxu0 0
        %861 = vmatprep.subr.bf16.mxu0 0
        %862 = vmatpush1.bf16.xpose.msra.mxu0 0
        %863 = vmatprep.subr.bf16.mxu0 0
        %864 = vmatpush1.bf16.xpose.msra.mxu0 0
        %865 = vmatprep.mubr.bf16.mxu0 0
        %866 = vmatmul.mubr.bf16.gmra.mrb[0].mxu0 %v828
        %v867 = vpop.f32.mrb[0].mxu0
        %v868 = vadd.f32 %v778, %v867
        %v869 = vpop.f32.mrb[0].mxu0
        %v870 = vpop.f32.mrb[0].mxu0
        %v871 = vpop.f32.mrb[0].mxu0
        %872 = vdwg.mxu0
        %v874 = vsel %vm780, %v771, 0
        %v877 = vsel %vm780, %v767, 0
        %879 = vmatprep.subr.bf16.mxu0 0
        %880 = vmatpush1.bf16.xpose.msra.mxu0 %v877
        %881 = vmatprep.subr.bf16.mxu0 0
        %882 = vmatpush1.bf16.xpose.msra.mxu0 0
        %883 = vmatprep.subr.bf16.mxu0 0
        %884 = vmatpush1.bf16.xpose.msra.mxu0 0
        %885 = vmatprep.subr.bf16.mxu0 0
        %886 = vmatpush1.bf16.xpose.msra.mxu0 0
        %887 = vmatprep.subr.bf16.mxu0 0
        %888 = vmatpush1.bf16.xpose.msra.mxu0 0
        %889 = vmatprep.subr.bf16.mxu0 0
        %890 = vmatpush1.bf16.xpose.msra.mxu0 0
        %891 = vmatprep.subr.bf16.mxu0 0
        %892 = vmatpush1.bf16.xpose.msra.mxu0 0
        %893 = vmatprep.subr.bf16.mxu0 0
        %894 = vmatpush1.bf16.xpose.msra.mxu0 0
        %895 = vmatprep.subr.bf16.mxu0 0
        %896 = vmatpush1.bf16.xpose.msra.mxu0 0
        %897 = vmatprep.subr.bf16.mxu0 0
        %898 = vmatpush1.bf16.xpose.msra.mxu0 0
        %899 = vmatprep.subr.bf16.mxu0 0
        %900 = vmatpush1.bf16.xpose.msra.mxu0 0
        %901 = vmatprep.subr.bf16.mxu0 0
        %902 = vmatpush1.bf16.xpose.msra.mxu0 0
        %903 = vmatprep.subr.bf16.mxu0 0
        %904 = vmatpush1.bf16.xpose.msra.mxu0 0
        %905 = vmatprep.subr.bf16.mxu0 0
        %906 = vmatpush1.bf16.xpose.msra.mxu0 0
        %907 = vmatprep.subr.bf16.mxu0 0
        %908 = vmatpush1.bf16.xpose.msra.mxu0 0
        %909 = vmatprep.subr.bf16.mxu0 0
        %910 = vmatpush1.bf16.xpose.msra.mxu0 0
        %911 = vmatprep.mubr.bf16.mxu0 0
        %912 = vmatmul.mubr.bf16.gmra.mrb[0].mxu0 %v874
        %v913 = vpop.f32.mrb[0].mxu0
        %v914 = vadd.f32 %v778, %v913
        %v915 = vpop.f32.mrb[0].mxu0
        %v916 = vpop.f32.mrb[0].mxu0
        %v917 = vpop.f32.mrb[0].mxu0
        %918 = vdwg.mxu0
        %v920 = vsel %vm780, %v772, 0
        %v923 = vsel %vm780, %v768, 0
        %925 = vmatprep.subr.bf16.mxu0 0
        %926 = vmatpush1.bf16.xpose.msra.mxu0 %v923
        %927 = vmatprep.subr.bf16.mxu0 0
        %928 = vmatpush1.bf16.xpose.msra.mxu0 0
        %929 = vmatprep.subr.bf16.mxu0 0
        %930 = vmatpush1.bf16.xpose.msra.mxu0 0
        %931 = vmatprep.subr.bf16.mxu0 0
        %932 = vmatpush1.bf16.xpose.msra.mxu0 0
        %933 = vmatprep.subr.bf16.mxu0 0
        %934 = vmatpush1.bf16.xpose.msra.mxu0 0
        %935 = vmatprep.subr.bf16.mxu0 0
        %936 = vmatpush1.bf16.xpose.msra.mxu0 0
        %937 = vmatprep.subr.bf16.mxu0 0
        %938 = vmatpush1.bf16.xpose.msra.mxu0 0
        %939 = vmatprep.subr.bf16.mxu0 0
        %940 = vmatpush1.bf16.xpose.msra.mxu0 0
        %941 = vmatprep.subr.bf16.mxu0 0
        %942 = vmatpush1.bf16.xpose.msra.mxu0 0
        %943 = vmatprep.subr.bf16.mxu0 0
        %944 = vmatpush1.bf16.xpose.msra.mxu0 0
        %945 = vmatprep.subr.bf16.mxu0 0
        %946 = vmatpush1.bf16.xpose.msra.mxu0 0
        %947 = vmatprep.subr.bf16.mxu0 0
        %948 = vmatpush1.bf16.xpose.msra.mxu0 0
        %949 = vmatprep.subr.bf16.mxu0 0
        %950 = vmatpush1.bf16.xpose.msra.mxu0 0
        %951 = vmatprep.subr.bf16.mxu0 0
        %952 = vmatpush1.bf16.xpose.msra.mxu0 0
        %953 = vmatprep.subr.bf16.mxu0 0
        %954 = vmatpush1.bf16.xpose.msra.mxu0 0
        %955 = vmatprep.subr.bf16.mxu0 0
        %956 = vmatpush1.bf16.xpose.msra.mxu0 0
        %957 = vmatprep.mubr.bf16.mxu0 0
        %958 = vmatmul.mubr.bf16.gmra.mrb[0].mxu0 %v920
        %v959 = vpop.f32.mrb[0].mxu0
        %v960 = vadd.f32 %v778, %v959
        %v961 = vpop.f32.mrb[0].mxu0
        %v962 = vpop.f32.mrb[0].mxu0
        %v963 = vpop.f32.mrb[0].mxu0
        %964 = vdwg.mxu0
        %v965 = vld [vmem:[#allocation3] sm:$0xff]
        %v966 = vld [vmem:[#allocation3 + $0x8] sm:$0xff]
        %v967 = vld [vmem:[#allocation3 + $0x10] sm:$0xff]
        %v968 = vld [vmem:[#allocation3 + $0x18] sm:$0xff]
        %v969 = vsel %vm780, %v822, -inf
        %970 = vmax.xlane.f32.xlu0 %v969
        %v971 = vpop.xlane.xlu0 %970
        %v972 = vsel %vm780, %v868, -inf
        %973 = vmax.xlane.f32.xlu0 %v972
        %v974 = vpop.xlane.xlu0 %973
        %v975 = vsel %vm780, %v914, -inf
        %976 = vmax.xlane.f32.xlu0 %v975
        %v977 = vpop.xlane.xlu0 %976
        %v978 = vsel %vm780, %v960, -inf
        %979 = vmax.xlane.f32.xlu0 %v978
        %v980 = vpop.xlane.xlu0 %979
        %v981 = vmax.f32 %v965, %v971
        %v982 = vmax.f32 %v966, %v974
        %v983 = vmax.f32 %v967, %v977
        %v984 = vmax.f32 %v968, %v980
        %v985 = vsub.f32 %v965, %v981
        %v986 = vsub.f32 %v966, %v982
        %v987 = vsub.f32 %v967, %v983
        %v988 = vsub.f32 %v968, %v984
        %v989 = vmul.f32 %v985, 1.442695
        %v990 = vpow.pop %v989
        %v991 = vmul.f32 %v986, 1.442695
        %v992 = vpow.pop %v991
        %v993 = vmul.f32 %v987, 1.442695
        %v994 = vpow.pop %v993
        %v995 = vmul.f32 %v988, 1.442695
        %v996 = vpow.pop %v995
        %998 = vset.pattern.permute.xlu0 0
        %999 = vperm.xlu0 %998, %v981
        %v1000 = vpop.permute.xlu0 %999
        %1003 = vset.pattern.permute.xlu0 0
        %1004 = vperm.xlu0 %1003, %v982
        %v1005 = vpop.permute.xlu0 %1004
        %1008 = vset.pattern.permute.xlu0 0
        %1009 = vperm.xlu0 %1008, %v983
        %v1010 = vpop.permute.xlu0 %1009
        %1013 = vset.pattern.permute.xlu0 0
        %1014 = vperm.xlu0 %1013, %v984
        %v1015 = vpop.permute.xlu0 %1014
        %v1017 = vsub.f32 %v822, %v1000
        %v1018 = vsub.f32 %v868, %v1005
        %v1019 = vsub.f32 %v914, %v1010
        %v1020 = vsub.f32 %v960, %v1015
        %v1021 = vmul.f32 %v1017, 1.442695
        %v1022 = vpow.pop %v1021
        %v1023 = vmul.f32 %v1018, 1.442695
        %v1024 = vpow.pop %v1023
        %v1025 = vmul.f32 %v1019, 1.442695
        %v1026 = vpow.pop %v1025
        %v1027 = vmul.f32 %v1020, 1.442695
        %v1028 = vpow.pop %v1027
        %v1029 = vld [vmem:[#allocation4] sm:$0xff]
        %v1030 = vld [vmem:[#allocation4 + $0x8] sm:$0xff]
        %v1031 = vld [vmem:[#allocation4 + $0x10] sm:$0xff]
        %v1032 = vld [vmem:[#allocation4 + $0x18] sm:$0xff]
        %v1033 = vmul.f32 %v990, %v1029
        %v1034 = vmul.f32 %v992, %v1030
        %v1035 = vmul.f32 %v994, %v1031
        %v1036 = vmul.f32 %v996, %v1032
        %v1037 = vsel %vm780, %v1022, 0.0
        %1038 = vadd.xlane.f32.xlu0 %v1037
        %v1039 = vpop.xlane.xlu0 %1038
        %v1040 = vsel %vm780, %v1024, 0.0
        %1041 = vadd.xlane.f32.xlu0 %v1040
        %v1042 = vpop.xlane.xlu0 %1041
        %v1043 = vsel %vm780, %v1026, 0.0
        %1044 = vadd.xlane.f32.xlu0 %v1043
        %v1045 = vpop.xlane.xlu0 %1044
        %v1046 = vsel %vm780, %v1028, 0.0
        %1047 = vadd.xlane.f32.xlu0 %v1046
        %v1048 = vpop.xlane.xlu0 %1047
        %v1049 = vadd.f32 %v1033, %v1039
        %v1050 = vadd.f32 %v1034, %v1042
        %v1051 = vadd.f32 %v1035, %v1045
        %v1052 = vadd.f32 %v1036, %v1048
        %vm1053 = vcmask 7168
        %1054 = vst.msk [vmem:[#allocation4] sm:$0xff] %vm1053, %v1049
        %1055 = vst.msk [vmem:[#allocation4 + $0x8] sm:$0xff] %vm1053, %v1050
        %1056 = vst.msk [vmem:[#allocation4 + $0x10] sm:$0xff] %vm1053, %v1051
        %1057 = vst.msk [vmem:[#allocation4 + $0x18] sm:$0xff] %vm1053, %v1052
        %v1058 = vld [vmem:[#allocation5] sm:$0xff]
        %v1059 = vld [vmem:[#allocation5 + $0x8] sm:$0xff]
        %v1060 = vld [vmem:[#allocation5 + $0x10] sm:$0xff]
        %v1061 = vld [vmem:[#allocation5 + $0x18] sm:$0xff]
        %1063 = vset.pattern.permute.xlu0 0
        %1064 = vperm.xlu0 %1063, %v990
        %v1065 = vpop.permute.xlu0 %1064
        %1068 = vset.pattern.permute.xlu0 0
        %1069 = vperm.xlu0 %1068, %v992
        %v1070 = vpop.permute.xlu0 %1069
        %1073 = vset.pattern.permute.xlu0 0
        %1074 = vperm.xlu0 %1073, %v994
        %v1075 = vpop.permute.xlu0 %1074
        %1078 = vset.pattern.permute.xlu0 0
        %1079 = vperm.xlu0 %1078, %v996
        %v1080 = vpop.permute.xlu0 %1079
        %v1082 = vmul.f32 %v1065, %v1058
        %v1083 = vmul.f32 %v1070, %v1059
        %v1084 = vmul.f32 %v1075, %v1060
        %v1085 = vmul.f32 %v1080, %v1061
        %v1086 = vpack.c.bf16 %v1022, %v1022
        %v1087 = vpack.c.bf16 %v1024, %v1024
        %v1088 = vpack.c.bf16 %v1026, %v1026
        %v1089 = vpack.c.bf16 %v1028, %v1028
        %1091 = vrot.lane.b32.xlu0 %v765, 96
        %v1092 = vpop.permute.xlu0 %1091
        %v1094 = vsel %vm780, %v1086, 0
        %vm1096 = vcmask 1043456
        %v1098 = vsel %vm1096, %v1092, 0
        %1100 = vmatprep.subr.bf16.mxu0 0
        %1101 = vmatpush1.bf16.msra.mxu0 %v1098
        %1102 = vmatprep.subr.bf16.mxu0 0
        %1103 = vmatpush1.bf16.msra.mxu0 0
        %1104 = vmatprep.subr.bf16.mxu0 0
        %1105 = vmatpush1.bf16.msra.mxu0 0
        %1106 = vmatprep.subr.bf16.mxu0 0
        %1107 = vmatpush1.bf16.msra.mxu0 0
        %1108 = vmatprep.subr.bf16.mxu0 0
        %1109 = vmatpush1.bf16.msra.mxu0 0
        %1110 = vmatprep.subr.bf16.mxu0 0
        %1111 = vmatpush1.bf16.msra.mxu0 0
        %1112 = vmatprep.subr.bf16.mxu0 0
        %1113 = vmatpush1.bf16.msra.mxu0 0
        %1114 = vmatprep.subr.bf16.mxu0 0
        %1115 = vmatpush1.bf16.msra.mxu0 0
        %1116 = vmatprep.subr.bf16.mxu0 0
        %1117 = vmatpush1.bf16.msra.mxu0 0
        %1118 = vmatprep.subr.bf16.mxu0 0
        %1119 = vmatpush1.bf16.msra.mxu0 0
        %1120 = vmatprep.subr.bf16.mxu0 0
        %1121 = vmatpush1.bf16.msra.mxu0 0
        %1122 = vmatprep.subr.bf16.mxu0 0
        %1123 = vmatpush1.bf16.msra.mxu0 0
        %1124 = vmatprep.subr.bf16.mxu0 0
        %1125 = vmatpush1.bf16.msra.mxu0 0
        %1126 = vmatprep.subr.bf16.mxu0 0
        %1127 = vmatpush1.bf16.msra.mxu0 0
        %1128 = vmatprep.subr.bf16.mxu0 0
        %1129 = vmatpush1.bf16.msra.mxu0 0
        %1130 = vmatprep.subr.bf16.mxu0 0
        %1131 = vmatpush1.bf16.msra.mxu0 0
        %1132 = vmatprep.mubr.bf16.mxu0 0
        %1133 = vmatmul.mubr.bf16.gmra.mrb[0].mxu0 %v1094
        %v1134 = vpop.f32.mrb[0].mxu0
        %v1135 = vadd.f32 0.0, %v1134
        %v1136 = vpop.f32.mrb[0].mxu0
        %v1137 = vpop.f32.mrb[0].mxu0
        %v1138 = vpop.f32.mrb[0].mxu0
        %1139 = vdwg.mxu0
        %1141 = vrot.lane.b32.xlu0 %v766, 96
        %v1142 = vpop.permute.xlu0 %1141
        %v1144 = vsel %vm780, %v1087, 0
        %v1147 = vsel %vm1096, %v1142, 0
        %1149 = vmatprep.subr.bf16.mxu0 0
        %1150 = vmatpush1.bf16.msra.mxu0 %v1147
        %1151 = vmatprep.subr.bf16.mxu0 0
        %1152 = vmatpush1.bf16.msra.mxu0 0
        %1153 = vmatprep.subr.bf16.mxu0 0
        %1154 = vmatpush1.bf16.msra.mxu0 0
        %1155 = vmatprep.subr.bf16.mxu0 0
        %1156 = vmatpush1.bf16.msra.mxu0 0
        %1157 = vmatprep.subr.bf16.mxu0 0
        %1158 = vmatpush1.bf16.msra.mxu0 0
        %1159 = vmatprep.subr.bf16.mxu0 0
        %1160 = vmatpush1.bf16.msra.mxu0 0
        %1161 = vmatprep.subr.bf16.mxu0 0
        %1162 = vmatpush1.bf16.msra.mxu0 0
        %1163 = vmatprep.subr.bf16.mxu0 0
        %1164 = vmatpush1.bf16.msra.mxu0 0
        %1165 = vmatprep.subr.bf16.mxu0 0
        %1166 = vmatpush1.bf16.msra.mxu0 0
        %1167 = vmatprep.subr.bf16.mxu0 0
        %1168 = vmatpush1.bf16.msra.mxu0 0
        %1169 = vmatprep.subr.bf16.mxu0 0
        %1170 = vmatpush1.bf16.msra.mxu0 0
        %1171 = vmatprep.subr.bf16.mxu0 0
        %1172 = vmatpush1.bf16.msra.mxu0 0
        %1173 = vmatprep.subr.bf16.mxu0 0
        %1174 = vmatpush1.bf16.msra.mxu0 0
        %1175 = vmatprep.subr.bf16.mxu0 0
        %1176 = vmatpush1.bf16.msra.mxu0 0
        %1177 = vmatprep.subr.bf16.mxu0 0
        %1178 = vmatpush1.bf16.msra.mxu0 0
        %1179 = vmatprep.subr.bf16.mxu0 0
        %1180 = vmatpush1.bf16.msra.mxu0 0
        %1181 = vmatprep.mubr.bf16.mxu0 0
        %1182 = vmatmul.mubr.bf16.gmra.mrb[0].mxu0 %v1144
        %v1183 = vpop.f32.mrb[0].mxu0
        %v1184 = vadd.f32 0.0, %v1183
        %v1185 = vpop.f32.mrb[0].mxu0
        %v1186 = vpop.f32.mrb[0].mxu0
        %v1187 = vpop.f32.mrb[0].mxu0
        %1188 = vdwg.mxu0
        %1190 = vrot.lane.b32.xlu0 %v767, 96
        %v1191 = vpop.permute.xlu0 %1190
        %v1193 = vsel %vm780, %v1088, 0
        %v1196 = vsel %vm1096, %v1191, 0
        %1198 = vmatprep.subr.bf16.mxu0 0
        %1199 = vmatpush1.bf16.msra.mxu0 %v1196
        %1200 = vmatprep.subr.bf16.mxu0 0
        %1201 = vmatpush1.bf16.msra.mxu0 0
        %1202 = vmatprep.subr.bf16.mxu0 0
        %1203 = vmatpush1.bf16.msra.mxu0 0
        %1204 = vmatprep.subr.bf16.mxu0 0
        %1205 = vmatpush1.bf16.msra.mxu0 0
        %1206 = vmatprep.subr.bf16.mxu0 0
        %1207 = vmatpush1.bf16.msra.mxu0 0
        %1208 = vmatprep.subr.bf16.mxu0 0
        %1209 = vmatpush1.bf16.msra.mxu0 0
        %1210 = vmatprep.subr.bf16.mxu0 0
        %1211 = vmatpush1.bf16.msra.mxu0 0
        %1212 = vmatprep.subr.bf16.mxu0 0
        %1213 = vmatpush1.bf16.msra.mxu0 0
        %1214 = vmatprep.subr.bf16.mxu0 0
        %1215 = vmatpush1.bf16.msra.mxu0 0
        %1216 = vmatprep.subr.bf16.mxu0 0
        %1217 = vmatpush1.bf16.msra.mxu0 0
        %1218 = vmatprep.subr.bf16.mxu0 0
        %1219 = vmatpush1.bf16.msra.mxu0 0
        %1220 = vmatprep.subr.bf16.mxu0 0
        %1221 = vmatpush1.bf16.msra.mxu0 0
        %1222 = vmatprep.subr.bf16.mxu0 0
        %1223 = vmatpush1.bf16.msra.mxu0 0
        %1224 = vmatprep.subr.bf16.mxu0 0
        %1225 = vmatpush1.bf16.msra.mxu0 0
        %1226 = vmatprep.subr.bf16.mxu0 0
        %1227 = vmatpush1.bf16.msra.mxu0 0
        %1228 = vmatprep.subr.bf16.mxu0 0
        %1229 = vmatpush1.bf16.msra.mxu0 0
        %1230 = vmatprep.mubr.bf16.mxu0 0
        %1231 = vmatmul.mubr.bf16.gmra.mrb[0].mxu0 %v1193
        %v1232 = vpop.f32.mrb[0].mxu0
        %v1233 = vadd.f32 0.0, %v1232
        %v1234 = vpop.f32.mrb[0].mxu0
        %v1235 = vpop.f32.mrb[0].mxu0
        %v1236 = vpop.f32.mrb[0].mxu0
        %1237 = vdwg.mxu0
        %1239 = vrot.lane.b32.xlu0 %v768, 96
        %v1240 = vpop.permute.xlu0 %1239
        %v1242 = vsel %vm780, %v1089, 0
        %v1245 = vsel %vm1096, %v1240, 0
        %1247 = vmatprep.subr.bf16.mxu0 0
        %1248 = vmatpush1.bf16.msra.mxu0 %v1245
        %1249 = vmatprep.subr.bf16.mxu0 0
        %1250 = vmatpush1.bf16.msra.mxu0 0
        %1251 = vmatprep.subr.bf16.mxu0 0
        %1252 = vmatpush1.bf16.msra.mxu0 0
        %1253 = vmatprep.subr.bf16.mxu0 0
        %1254 = vmatpush1.bf16.msra.mxu0 0
        %1255 = vmatprep.subr.bf16.mxu0 0
        %1256 = vmatpush1.bf16.msra.mxu0 0
        %1257 = vmatprep.subr.bf16.mxu0 0
        %1258 = vmatpush1.bf16.msra.mxu0 0
        %1259 = vmatprep.subr.bf16.mxu0 0
        %1260 = vmatpush1.bf16.msra.mxu0 0
        %1261 = vmatprep.subr.bf16.mxu0 0
        %1262 = vmatpush1.bf16.msra.mxu0 0
        %1263 = vmatprep.subr.bf16.mxu0 0
        %1264 = vmatpush1.bf16.msra.mxu0 0
        %1265 = vmatprep.subr.bf16.mxu0 0
        %1266 = vmatpush1.bf16.msra.mxu0 0
        %1267 = vmatprep.subr.bf16.mxu0 0
        %1268 = vmatpush1.bf16.msra.mxu0 0
        %1269 = vmatprep.subr.bf16.mxu0 0
        %1270 = vmatpush1.bf16.msra.mxu0 0
        %1271 = vmatprep.subr.bf16.mxu0 0
        %1272 = vmatpush1.bf16.msra.mxu0 0
        %1273 = vmatprep.subr.bf16.mxu0 0
        %1274 = vmatpush1.bf16.msra.mxu0 0
        %1275 = vmatprep.subr.bf16.mxu0 0
        %1276 = vmatpush1.bf16.msra.mxu0 0
        %1277 = vmatprep.subr.bf16.mxu0 0
        %1278 = vmatpush1.bf16.msra.mxu0 0
        %1279 = vmatprep.mubr.bf16.mxu0 0
        %1280 = vmatmul.mubr.bf16.gmra.mrb[0].mxu0 %v1242
        %v1281 = vpop.f32.mrb[0].mxu0
        %v1282 = vadd.f32 0.0, %v1281
        %v1283 = vpop.f32.mrb[0].mxu0
        %v1284 = vpop.f32.mrb[0].mxu0
        %v1285 = vpop.f32.mrb[0].mxu0
        %1286 = vdwg.mxu0
        %v1287 = vadd.f32 %v1082, %v1135
        %v1288 = vadd.f32 %v1083, %v1184
        %v1289 = vadd.f32 %v1084, %v1233
        %v1290 = vadd.f32 %v1085, %v1282
        %1291 = vst.msk [vmem:[#allocation5] sm:$0xff] %vm780, %v1287
        %1292 = vst.msk [vmem:[#allocation5 + $0x8] sm:$0xff] %vm780, %v1288
        %1293 = vst.msk [vmem:[#allocation5 + $0x10] sm:$0xff] %vm780, %v1289
        %1294 = vst.msk [vmem:[#allocation5 + $0x18] sm:$0xff] %vm780, %v1290
        %1295 = vst.msk [vmem:[#allocation3] sm:$0xff] %vm1053, %v981
        %1296 = vst.msk [vmem:[#allocation3 + $0x8] sm:$0xff] %vm1053, %v982
        %1297 = vst.msk [vmem:[#allocation3 + $0x10] sm:$0xff] %vm1053, %v983
        %1298 = vst.msk [vmem:[#allocation3 + $0x18] sm:$0xff] %vm1053, %v984
        // Predicated region
        $region93: #{tpu_custom_call.1} parent=75 // pred_check
          %p1299 = pneg %p593
        $region94: #{tpu_custom_call.1} parent=75 // pred_check_branch
          %1301 = sbr.rel (%p1299) target = $region96
        $region95: #{tpu_custom_call.1} parent=75 // pred_region
          %v1302 = vld [vmem:[%s578] sm:$0xff]
          %v1303 = vld [vmem:[#allocation4] sm:$0xff]
          %v1304 = vld [vmem:[#allocation4 + $0x8] sm:$0xff]
          %v1305 = vld [vmem:[#allocation4 + $0x10] sm:$0xff]
          %v1306 = vld [vmem:[#allocation4 + $0x18] sm:$0xff]
          %v1307 = vmax.f32 %v1303, 1e-20
          %v1308 = vmax.f32 %v1304, 1e-20
          %v1309 = vmax.f32 %v1305, 1e-20
          %v1310 = vmax.f32 %v1306, 1e-20
          %v1311 = vrcp.pop %v1307
          %v1312 = vrcp.pop %v1308
          %v1313 = vrcp.pop %v1309
          %v1314 = vrcp.pop %v1310
          %v1315 = vld [vmem:[#allocation5] sm:$0xff]
          %v1316 = vld [vmem:[#allocation5 + $0x8] sm:$0xff]
          %v1317 = vld [vmem:[#allocation5 + $0x10] sm:$0xff]
          %v1318 = vld [vmem:[#allocation5 + $0x18] sm:$0xff]
          %1320 = vset.pattern.permute.xlu0 0
          %1321 = vperm.xlu0 %1320, %v1311
          %v1322 = vpop.permute.xlu0 %1321
          %1325 = vset.pattern.permute.xlu0 0
          %1326 = vperm.xlu0 %1325, %v1312
          %v1327 = vpop.permute.xlu0 %1326
          %1330 = vset.pattern.permute.xlu0 0
          %1331 = vperm.xlu0 %1330, %v1313
          %v1332 = vpop.permute.xlu0 %1331
          %1335 = vset.pattern.permute.xlu0 0
          %1336 = vperm.xlu0 %1335, %v1314
          %v1337 = vpop.permute.xlu0 %1336
          %v1339 = vmul.f32 %v1315, %v1322
          %v1340 = vmul.f32 %v1316, %v1327
          %v1341 = vmul.f32 %v1317, %v1332
          %v1342 = vmul.f32 %v1318, %v1337
          %1344 = vrot.lane.b32.xlu0 %v1340, 8
          %v1345 = vpop.permute.xlu0 %1344
          %1348 = vrot.lane.b32.xlu0 %v1341, 16
          %v1349 = vpop.permute.xlu0 %1348
          %1352 = vrot.lane.b32.xlu0 %v1342, 24
          %v1353 = vpop.permute.xlu0 %1352
          %v1355 = vsel %vm780, %v1339, %v1345
          %vm1356 = vcmask 130048
          %v1357 = vsel %vm1356, %v1355, %v1349
          %vm1358 = vcmask 195584
          %v1359 = vsel %vm1358, %v1357, %v1353
          %v1360 = vpack.c.bf16 %v1359, %v1359
          %v1361 = vld [vmem:[#allocation9] sm:$0xf]
          %v1362 = vld [vmem:[#allocation9 + $0x4] sm:$0xf]
          %v1363 = vld [vmem:[#allocation9 + $0x8] sm:$0xf]
          %v1364 = vld [vmem:[#allocation9 + $0xc] sm:$0xf]
          %v1369 = vunpack.c.l.b16 %v1361
          %v1370 = vunpack.c.l.b16 %v1362
          %v1371 = vunpack.c.l.b16 %v1363
          %v1372 = vunpack.c.l.b16 %v1364
          %v1373 = vpack.c.b16 %v1370, %v1369
          %v1374 = vpack.c.b16 %v1372, %v1371
          %v1378 = vsel %vm711, %v1360, 0
          %1380 = vmatprep.subr.bf16.mxu0 0
          %1381 = vmatpush1.bf16.msra.mxu0 %v1373
          %1382 = vmatprep.subr.bf16.mxu0 0
          %1383 = vmatpush1.bf16.msra.mxu0 %v1374
          %1384 = vmatprep.subr.bf16.mxu0 0
          %1385 = vmatpush1.bf16.msra.mxu0 0
          %1386 = vmatprep.subr.bf16.mxu0 0
          %1387 = vmatpush1.bf16.msra.mxu0 0
          %1388 = vmatprep.subr.bf16.mxu0 0
          %1389 = vmatpush1.bf16.msra.mxu0 0
          %1390 = vmatprep.subr.bf16.mxu0 0
          %1391 = vmatpush1.bf16.msra.mxu0 0
          %1392 = vmatprep.subr.bf16.mxu0 0
          %1393 = vmatpush1.bf16.msra.mxu0 0
          %1394 = vmatprep.subr.bf16.mxu0 0
          %1395 = vmatpush1.bf16.msra.mxu0 0
          %1396 = vmatprep.subr.bf16.mxu0 0
          %1397 = vmatpush1.bf16.msra.mxu0 0
          %1398 = vmatprep.subr.bf16.mxu0 0
          %1399 = vmatpush1.bf16.msra.mxu0 0
          %1400 = vmatprep.subr.bf16.mxu0 0
          %1401 = vmatpush1.bf16.msra.mxu0 0
          %1402 = vmatprep.subr.bf16.mxu0 0
          %1403 = vmatpush1.bf16.msra.mxu0 0
          %1404 = vmatprep.subr.bf16.mxu0 0
          %1405 = vmatpush1.bf16.msra.mxu0 0
          %1406 = vmatprep.subr.bf16.mxu0 0
          %1407 = vmatpush1.bf16.msra.mxu0 0
          %1408 = vmatprep.subr.bf16.mxu0 0
          %1409 = vmatpush1.bf16.msra.mxu0 0
          %1410 = vmatprep.subr.bf16.mxu0 0
          %1411 = vmatpush1.bf16.msra.mxu0 0
          %1412 = vmatprep.mubr.bf16.mxu0 0
          %1413 = vmatmul.mubr.bf16.gmra.mrb[0].mxu0 %v1378
          %v1414 = vpop.f32.mrb[0].mxu0
          %v1415 = vadd.f32 0.0, %v1414
          %v1416 = vpop.f32.mrb[0].mxu0
          %v1417 = vpop.f32.mrb[0].mxu0
          %v1418 = vpop.f32.mrb[0].mxu0
          %1419 = vdwg.mxu0
          %v1420 = vld [vmem:[%s6] sm:$0x1]
          %v1421 = vld [vmem:[%s7] sm:$0x1]
          %v1422 = vsel %vm711, %v1415, 0.0
          %1423 = vadd.xlane.f32.xlu0 %v1422
          %v1424 = vpop.xlane.xlu0 %1423
          %v1425 = vrcp.pop 32.0
          %v1426 = vmul.f32 %v1424, %v1425
          %v1427 = vsub.f32 %v1415, %v1426
          %v1428 = vmul.f32 %v1427, %v1427
          %v1429 = vsel %vm711, %v1428, 0.0
          %1430 = vadd.xlane.f32.xlu0 %v1429
          %v1431 = vpop.xlane.xlu0 %1430
          %v1432 = vmul.f32 %v1431, %v1425
          %v1433 = vadd.f32 %v1432, 1e-05
          %v1434 = vrsqrt.pop %v1433
          %v1435 = vmul.f32 %v1427, %v1434
          %v1437 = vlaneseq
          %v1438 = vshrl.u32 %v1437, 7
          %v1439 = vsub.s32 0, %v1438
          %v1440 = vrot.slane %v1420, %v1439
          %v1442 = vmul.f32 %v1435, %v1440
          %v1444 = vlaneseq
          %v1445 = vshrl.u32 %v1444, 7
          %v1446 = vsub.s32 0, %v1445
          %v1447 = vrot.slane %v1421, %v1446
          %v1449 = vadd.f32 %v1442, %v1447
          %v1450 = vadd.f32 %v1449, %v1302
          %v1451 = vpack.c.bf16 %v1450, %v1450
          %v1452 = vld [vmem:[#allocation11] sm:$0xf]
          %v1453 = vld [vmem:[#allocation11 + $0x4] sm:$0xf]
          %v1454 = vld [vmem:[#allocation11 + $0x8] sm:$0xf]
          %v1455 = vld [vmem:[#allocation11 + $0xc] sm:$0xf]
          %v1456 = vld [vmem:[%s9] sm:$0x1]
          %v1458 = vlaneseq
          %v1459 = vshrl.u32 %v1458, 7
          %v1460 = vsub.s32 0, %v1459
          %v1461 = vrot.slane %v1456, %v1460
          %v1467 = vunpack.c.l.b16 %v1452
          %v1468 = vunpack.c.l.b16 %v1453
          %v1469 = vunpack.c.l.b16 %v1454
          %v1470 = vunpack.c.l.b16 %v1455
          %v1471 = vpack.c.b16 %v1468, %v1467
          %v1472 = vpack.c.b16 %v1470, %v1469
          %v1476 = vsel %vm711, %v1451, 0
          %1478 = vmatprep.subr.bf16.mxu0 0
          %1479 = vmatpush1.bf16.msra.mxu0 %v1471
          %1480 = vmatprep.subr.bf16.mxu0 0
          %1481 = vmatpush1.bf16.msra.mxu0 %v1472
          %1482 = vmatprep.subr.bf16.mxu0 0
          %1483 = vmatpush1.bf16.msra.mxu0 0
          %1484 = vmatprep.subr.bf16.mxu0 0
          %1485 = vmatpush1.bf16.msra.mxu0 0
          %1486 = vmatprep.subr.bf16.mxu0 0
          %1487 = vmatpush1.bf16.msra.mxu0 0
          %1488 = vmatprep.subr.bf16.mxu0 0
          %1489 = vmatpush1.bf16.msra.mxu0 0
          %1490 = vmatprep.subr.bf16.mxu0 0
          %1491 = vmatpush1.bf16.msra.mxu0 0
          %1492 = vmatprep.subr.bf16.mxu0 0
          %1493 = vmatpush1.bf16.msra.mxu0 0
          %1494 = vmatprep.subr.bf16.mxu0 0
          %1495 = vmatpush1.bf16.msra.mxu0 0
          %1496 = vmatprep.subr.bf16.mxu0 0
          %1497 = vmatpush1.bf16.msra.mxu0 0
          %1498 = vmatprep.subr.bf16.mxu0 0
          %1499 = vmatpush1.bf16.msra.mxu0 0
          %1500 = vmatprep.subr.bf16.mxu0 0
          %1501 = vmatpush1.bf16.msra.mxu0 0
          %1502 = vmatprep.subr.bf16.mxu0 0
          %1503 = vmatpush1.bf16.msra.mxu0 0
          %1504 = vmatprep.subr.bf16.mxu0 0
          %1505 = vmatpush1.bf16.msra.mxu0 0
          %1506 = vmatprep.subr.bf16.mxu0 0
          %1507 = vmatpush1.bf16.msra.mxu0 0
          %1508 = vmatprep.subr.bf16.mxu0 0
          %1509 = vmatpush1.bf16.msra.mxu0 0
          %1510 = vmatprep.mubr.bf16.mxu0 0
          %1511 = vmatmul.mubr.bf16.gmra.mrb[0].mxu0 %v1476
          %v1512 = vpop.f32.mrb[0].mxu0
          %v1513 = vadd.f32 %v1461, %v1512
          %v1514 = vpop.f32.mrb[0].mxu0
          %v1515 = vpop.f32.mrb[0].mxu0
          %v1516 = vpop.f32.mrb[0].mxu0
          %1517 = vdwg.mxu0
          %v1518 = vmax.f32 %v1513, 0.0
          %v1519 = vpack.c.bf16 %v1518, %v1518
          %v1520 = vld [vmem:[%s10] sm:$0xf]
          %v1521 = vld [vmem:[%s10 + $0x4] sm:$0xf]
          %v1522 = vld [vmem:[%s10 + $0x8] sm:$0xf]
          %v1523 = vld [vmem:[%s10 + $0xc] sm:$0xf]
          %v1524 = vld [vmem:[%s10 + $0x10] sm:$0xf]
          %v1525 = vld [vmem:[%s10 + $0x14] sm:$0xf]
          %v1526 = vld [vmem:[%s10 + $0x18] sm:$0xf]
          %v1527 = vld [vmem:[%s10 + $0x1c] sm:$0xf]
          %v1528 = vld [vmem:[%s11] sm:$0x1]
          %v1530 = vlaneseq
          %v1531 = vshrl.u32 %v1530, 7
          %v1532 = vsub.s32 0, %v1531
          %v1533 = vrot.slane %v1528, %v1532
          %v1543 = vunpack.c.l.b16 %v1520
          %v1544 = vunpack.c.l.b16 %v1521
          %v1545 = vunpack.c.l.b16 %v1522
          %v1546 = vunpack.c.l.b16 %v1523
          %v1547 = vunpack.c.l.b16 %v1524
          %v1548 = vunpack.c.l.b16 %v1525
          %v1549 = vunpack.c.l.b16 %v1526
          %v1550 = vunpack.c.l.b16 %v1527
          %v1551 = vpack.c.b16 %v1544, %v1543
          %v1552 = vpack.c.b16 %v1546, %v1545
          %v1553 = vpack.c.b16 %v1548, %v1547
          %v1554 = vpack.c.b16 %v1550, %v1549
          %vm1559 = vcmask 523264
          %v1561 = vsel %vm1559, %v1519, 0
          %1563 = vmatprep.subr.bf16.mxu0 0
          %1564 = vmatpush1.bf16.msra.mxu0 %v1551
          %1565 = vmatprep.subr.bf16.mxu0 0
          %1566 = vmatpush1.bf16.msra.mxu0 %v1552
          %1567 = vmatprep.subr.bf16.mxu0 0
          %1568 = vmatpush1.bf16.msra.mxu0 %v1553
          %1569 = vmatprep.subr.bf16.mxu0 0
          %1570 = vmatpush1.bf16.msra.mxu0 %v1554
          %1571 = vmatprep.subr.bf16.mxu0 0
          %1572 = vmatpush1.bf16.msra.mxu0 0
          %1573 = vmatprep.subr.bf16.mxu0 0
          %1574 = vmatpush1.bf16.msra.mxu0 0
          %1575 = vmatprep.subr.bf16.mxu0 0
          %1576 = vmatpush1.bf16.msra.mxu0 0
          %1577 = vmatprep.subr.bf16.mxu0 0
          %1578 = vmatpush1.bf16.msra.mxu0 0
          %1579 = vmatprep.subr.bf16.mxu0 0
          %1580 = vmatpush1.bf16.msra.mxu0 0
          %1581 = vmatprep.subr.bf16.mxu0 0
          %1582 = vmatpush1.bf16.msra.mxu0 0
          %1583 = vmatprep.subr.bf16.mxu0 0
          %1584 = vmatpush1.bf16.msra.mxu0 0
          %1585 = vmatprep.subr.bf16.mxu0 0
          %1586 = vmatpush1.bf16.msra.mxu0 0
          %1587 = vmatprep.subr.bf16.mxu0 0
          %1588 = vmatpush1.bf16.msra.mxu0 0
          %1589 = vmatprep.subr.bf16.mxu0 0
          %1590 = vmatpush1.bf16.msra.mxu0 0
          %1591 = vmatprep.subr.bf16.mxu0 0
          %1592 = vmatpush1.bf16.msra.mxu0 0
          %1593 = vmatprep.subr.bf16.mxu0 0
          %1594 = vmatpush1.bf16.msra.mxu0 0
          %1595 = vmatprep.mubr.bf16.mxu0 0
          %1596 = vmatmul.mubr.bf16.gmra.mrb[0].mxu0 %v1561
          %v1597 = vpop.f32.mrb[0].mxu0
          %v1598 = vadd.f32 %v1533, %v1597
          %v1599 = vpop.f32.mrb[0].mxu0
          %v1600 = vpop.f32.mrb[0].mxu0
          %v1601 = vpop.f32.mrb[0].mxu0
          %1602 = vdwg.mxu0
          %v1603 = vld [vmem:[%s12] sm:$0x1]
          %v1604 = vld [vmem:[%s13] sm:$0x1]
          %v1605 = vsel %vm711, %v1598, 0.0
          %1606 = vadd.xlane.f32.xlu0 %v1605
          %v1607 = vpop.xlane.xlu0 %1606
          %v1608 = vmul.f32 %v1607, %v1425
          %v1609 = vsub.f32 %v1598, %v1608
          %v1610 = vmul.f32 %v1609, %v1609
          %v1611 = vsel %vm711, %v1610, 0.0
          %1612 = vadd.xlane.f32.xlu0 %v1611
          %v1613 = vpop.xlane.xlu0 %1612
          %v1614 = vmul.f32 %v1613, %v1425
          %v1615 = vadd.f32 %v1614, 1e-05
          %v1616 = vrsqrt.pop %v1615
          %v1617 = vmul.f32 %v1609, %v1616
          %v1619 = vlaneseq
          %v1620 = vshrl.u32 %v1619, 7
          %v1621 = vsub.s32 0, %v1620
          %v1622 = vrot.slane %v1603, %v1621
          %v1624 = vmul.f32 %v1617, %v1622
          %v1626 = vlaneseq
          %v1627 = vshrl.u32 %v1626, 7
          %v1628 = vsub.s32 0, %v1627
          %v1629 = vrot.slane %v1604, %v1628
          %v1631 = vadd.f32 %v1624, %v1629
          %v1632 = vadd.f32 %v1631, %v1450
          %1633 = vst.msk [vmem:[%s571] sm:$0xff] %vm711, %v1632
        $region96: #{tpu_custom_call.1} parent=75 // pred_fallthru
          _
        %s1634 = sand.u32 %s374, 1
        %s1635 = scalar_lea.sflag [#allocation8], %s1634
        %s1636 = sand.u32 %s374, 1
        %s1637 = smul.addr %s1636, 8
        %s1638 = scalar_lea.vmem [#allocation12], %s1637
        // Predicated region
        $region97: #{tpu_custom_call.1} parent=75 // pred_check
          %p1639 = pneg %p384
        $region98: #{tpu_custom_call.1} parent=75 // pred_check_branch
          %1641 = sbr.rel (%p1639) target = $region100
        $region99: #{tpu_custom_call.1} parent=75 // pred_region
          %s1643 = ssub.s32 128, 128
          %1644 = vsyncadd %s1635, %s1643
          %s1645 = sadd.s32 %s36, %s35
          %s1646 = smul.addr %s1645, 128
          %s1647 = scalar_lea.hbm %s14, %s1646
          %s1649 = sshll.u32 %s1638, 4
          %s1650 = int_to_ptr.vmem [resolvable:$true] %s1649
          %1652 = dma.vmem_to_hbm [thread:$0]  %s1650, 128, %s1647, %s1635
        $region100: #{tpu_custom_call.1} parent=75 // pred_fallthru
          _
      $region76: #{tpu_custom_call.1} parent=5 // pred_fallthru
        _
      %p1653 = scmp.le.s32.totalorder 2, %s25
      // Predicated region
      $region101: #{tpu_custom_call.1} parent=5 // pred_check
        %p1654 = pneg %p1653
      $region102: #{tpu_custom_call.1} parent=5 // pred_check_branch
        %1656 = sbr.rel (%p1654) target = $region104
      $region103: #{tpu_custom_call.1} parent=5 // pred_region
        %s1657 = ssub.s32 %s25, 2
        // Predicated region
        $region105: #{tpu_custom_call.1} parent=103 // pred_check
          %p1658 = pneg %p390
        $region106: #{tpu_custom_call.1} parent=103 // pred_check_branch
          %1660 = sbr.rel (%p1658) target = $region108
        $region107: #{tpu_custom_call.1} parent=103 // pred_region
          %s1661 = sand.u32 %s375, 1
          %s1662 = scalar_lea.sflag [#allocation8], %s1661
          %s1663 = sand.u32 %s375, 1
          %s1664 = smul.addr %s1663, 8
          %s1665 = scalar_lea.vmem [#allocation12], %s1664
          %1666 = dma.done %s1662, 128
        $region108: #{tpu_custom_call.1} parent=103 // pred_fallthru
          _
      $region104: #{tpu_custom_call.1} parent=5 // pred_fallthru
        _
    $region6: #{tpu_custom_call.1} parent=1 // loop_footer
      %s29 = sadd.s32 1, %s25
    $region7: #{tpu_custom_call.1} parent=1 // loop_footer_branch
      %24 = sbr.rel target = $region3
    $region8: #{tpu_custom_call.1} parent=1 // loop_exit
      _
    %1667 = vsyncpa [#allocation7], 1
    %s1668 = scalar_lea.sflag [#allocation7], 1
    %1669 = vsyncpa %s1668, 1
    %1670 = vsyncpa [#allocation10], 1
    %1671 = vsyncpa [#allocation8], 1
    %s1672 = scalar_lea.sflag [#allocation8], 1
    %1673 = vsyncpa %s1672, 1

</llo_original>
